<compile_context>
chip_gen: v5e
topology: v5e:2x2
jax: 0.10.0
libtpu: 0.0.40
codegen_flags: <defaults>
</compile_context>

<pallas_src>
import functools

import jax
import jax.numpy as jnp
from jax import lax
from jax.experimental import pallas as pl
from jax.experimental.pallas import tpu as pltpu


def _round_up(x, m):
    return ((x + m - 1) // m) * m


def char_rnn_kernel(xb_ref, tgt_ref, c_ref, cu_ref, ww_ref, vw_ref, vb_ref,
                    h0_ref, emb_ref, hall_ref, logits_ref, loss_ref, *, B, T):
    # xb_ref / tgt_ref : (B*T, 1) int32, time-major rows (row = t*B + b)
    # c_ref            : (Vp, Dp) f32      (padded embedding table)
    # cu_ref           : (Vp, Hp) bf16     (padded C @ Uw + Ub, bias folded in)
    # ww_ref           : (Hp, Hp) bf16
    # vw_ref           : (Hp, Vp) bf16     vb_ref : (1, Vp) f32 (pad lanes = -1e30)
    # h0_ref           : (1, Hp) f32
    # outputs: emb (BT,Dp) f32, h_all (BT,Hp) f32, logits (BT,Vp) f32, loss (1,1)
    BT = xb_ref.shape[0]
    Vp = c_ref.shape[0]
    Hp = ww_ref.shape[0]

    # --- one-hot(xb): drives both the exact embedding gather and the fused
    #     U-projection gather (rows of CU) ---
    idx = xb_ref[...]                                             # (BT, 1) int32
    col = lax.broadcasted_iota(jnp.int32, (BT, Vp), 1)            # (BT, Vp)
    onehot = (col == idx).astype(jnp.float32)

    # exact f32 row selection on the MXU (HIGHEST -> multi-pass, bit-faithful)
    emb_ref[...] = jnp.dot(onehot, c_ref[...],
                           preferred_element_type=jnp.float32,
                           precision=lax.Precision.HIGHEST)       # one dense store

    # pre-recurrence activations: a_all[row] = C[xb[row]] @ Uw + Ub,
    # gathered from the offline-fused CU table in a single bf16 MXU pass.
    a_all = jnp.dot(onehot.astype(jnp.bfloat16), cu_ref[...],
                    preferred_element_type=jnp.float32)           # (BT, Hp)

    # --- recurrence: only h @ W + tanh stays on the serial chain ---
    # TODO(synk): stage W once via pltpu.matmul_push_rhs/acc_lhs/pop to avoid
    # re-streaming the 256x256 tile each step; kept portable jnp.dot for now.
    h = jnp.broadcast_to(h0_ref[...], (B, Hp))                    # (B, Hp) f32
    for t in range(T):                                            # T small & static
        a_t = a_all[t * B:(t + 1) * B, :] + jnp.dot(
            h.astype(jnp.bfloat16), ww_ref[...],
            preferred_element_type=jnp.float32)
        h = jnp.tanh(a_t)
        hall_ref[t * B:(t + 1) * B, :] = h                        # contiguous rows

    # --- output projection + cross-entropy, batched over all B*T rows ---
    h_all = hall_ref[...]                                         # (BT, Hp)
    logits = jnp.dot(h_all.astype(jnp.bfloat16), vw_ref[...],
                     preferred_element_type=jnp.float32) + vb_ref[...]  # (BT, Vp)
    logits_ref[...] = logits                                      # one dense store

    m = jnp.max(logits, axis=-1, keepdims=True)
    lse = m + jnp.log(jnp.sum(jnp.exp(logits - m), axis=-1, keepdims=True))
    tgt = tgt_ref[...]                                            # (BT, 1)
    picked = jnp.sum(jnp.where(col == tgt, logits, 0.0), axis=-1, keepdims=True)
    loss_ref[...] = jnp.sum(lse - picked, keepdims=True) * (1.0 / float(BT))


def prepare_kernel_params(params):
    """One-time conversion to kernel layout: fused CU, transposed, padded, bf16."""
    C, Uw, Ub, Ww, Vw, Vb, h0 = params
    V, D = C.shape
    H = Ww.shape[0]
    Vp, Dp, Hp = _round_up(V, 128), _round_up(D, 128), _round_up(H, 128)

    CU = C @ Uw + Ub                                   # (V, H) f32, Ub folded in
    Cp = jnp.zeros((Vp, Dp), jnp.float32).at[:V, :D].set(C)
    CUp = jnp.zeros((Vp, Hp), jnp.float32).at[:V, :H].set(CU).astype(jnp.bfloat16)
    Wwp = jnp.zeros((Hp, Hp), jnp.float32).at[:H, :H].set(Ww).astype(jnp.bfloat16)
    Vwp = jnp.zeros((Hp, Vp), jnp.float32).at[:H, :V].set(Vw).astype(jnp.bfloat16)
    # padded vocab lanes get a large negative bias so they never affect the LSE
    Vbp = jnp.full((1, Vp), -1e30, jnp.float32).at[:, :V].set(Vb)
    h0p = jnp.zeros((1, Hp), jnp.float32).at[:, :H].set(h0)
    return (Cp, CUp, Wwp, Vwp, Vbp, h0p)


def char_rnn_forward(kparams, xb, targets, *, dims):
    V, D, H = dims
    Cp, CUp, Wwp, Vwp, Vbp, h0p = kparams
    B, T = xb.shape
    BT = B * T
    Vp, Dp = Cp.shape
    Hp = Wwp.shape[0]

    # time-major flattening (row = t*B + b): the kernel slices contiguous rows
    xb_tm = jnp.transpose(xb).reshape(BT, 1).astype(jnp.int32)
    tgt_tm = jnp.transpose(targets).reshape(BT, 1).astype(jnp.int32)

    def full(shape):
        return pl.BlockSpec(shape, lambda i, _n=len(shape): (0,) * _n)

    out_shapes = (
        jax.ShapeDtypeStruct((BT, Dp), jnp.float32),   # embeddings (time-major)
        jax.ShapeDtypeStruct((BT, Hp), jnp.float32),   # hidden states (time-major)
        jax.ShapeDtypeStruct((BT, Vp), jnp.float32),   # logits (time-major, padded)
        jax.ShapeDtypeStruct((1, 1), jnp.float32),     # loss
    )

    kernel = functools.partial(char_rnn_kernel, B=B, T=T)

    emb2d, hall2d, logits2d, loss = pl.pallas_call(
        kernel,
        out_shape=out_shapes,
        grid=(1,),
        in_specs=[
            full((BT, 1)),    # xb (time-major)
            full((BT, 1)),    # targets (time-major)
            full((Vp, Dp)),   # C
            full((Vp, Hp)),   # CU = C @ Uw + Ub   (fused, bf16)
            full((Hp, Hp)),   # W weight (transposed, bf16)
            full((Hp, Vp)),   # V weight (transposed, bf16)
            full((1, Vp)),    # V bias (padded with -1e30)
            full((1, Hp)),    # h_0
        ],
        out_specs=[full((BT, Dp)), full((BT, Hp)), full((BT, Vp)), full((1, 1))],
        compiler_params=pltpu.CompilerParams(dimension_semantics=("arbitrary",)),
    )(xb_tm, tgt_tm, Cp, CUp, Wwp, Vwp, Vbp, h0p)

    # layout glue back to the module's (B, T, feature) convention + unpad.
    # These are 16-row tensors fused into the same jitted program; cost is
    # negligible and kept out of the kernel to keep lowering simple.
    emb = emb2d.reshape(T, B, Dp).transpose(1, 0, 2)[:, :, :D]
    h_all = hall2d.reshape(T, B, Hp).transpose(1, 0, 2)[:, :, :H]
    logits = logits2d.reshape(T, B, Vp).transpose(1, 0, 2)[:, :, :V]
    return logits, loss[0, 0], emb, h_all


def init_params(key, vocab_size, d_model, n_hidden):
    ks = jax.random.split(key, 6)
    C = jax.random.normal(ks[0], (vocab_size, d_model), jnp.float32)
    Uw = jax.random.normal(ks[1], (d_model, n_hidden), jnp.float32) / jnp.sqrt(d_model)
    Ub = jax.random.normal(ks[2], (1, n_hidden), jnp.float32) * 0.01
    Ww = jax.random.normal(ks[3], (n_hidden, n_hidden), jnp.float32) / jnp.sqrt(n_hidden)
    Vw = jax.random.normal(ks[4], (n_hidden, vocab_size), jnp.float32) / jnp.sqrt(n_hidden)
    Vb = jax.random.normal(ks[5], (1, vocab_size), jnp.float32) * 0.01
    h0 = 0.1 * jnp.ones((1, n_hidden), jnp.float32)   # self.h_0 = 0.1 * ones(1, H)
    return (C, Uw, Ub, Ww, Vw, Vb, h0)


def _ref_forward(params, xb, targets):
    # Pure-JAX f32 reference of the PyTorch forward, for a sanity check.
    C, Uw, Ub, Ww, Vw, Vb, h0 = params
    B, T = xb.shape
    emb = jnp.take(C, xb, axis=0)
    h = jnp.broadcast_to(h0, (B, Ww.shape[0]))
    hs = []
    for t in range(T):
        h = jnp.tanh(emb[:, t, :] @ Uw + Ub + h @ Ww)
        hs.append(h)
    h_all = jnp.stack(hs, axis=1)
    logits = h_all @ Vw + Vb
    lg = logits.reshape(-1, logits.shape[-1])
    lse = jax.scipy.special.logsumexp(lg, axis=-1)
    picked = jnp.take_along_axis(lg, targets.reshape(-1, 1), axis=-1)[:, 0]
    loss = jnp.mean(lse - picked)
    return logits, loss


if __name__ == "__main__":
    vocab_size, d_model, n_hidden, block_size = 65, 24, 200, 8
    B, T = 2, block_size

    key = jax.random.PRNGKey(0)
    kp, kx, kt = jax.random.split(key, 3)
    params = init_params(kp, vocab_size, d_model, n_hidden)
    kparams = prepare_kernel_params(params)   # fused CU, padded / bf16, done once

    xb = jax.random.randint(kx, (B, T), 0, vocab_size, dtype=jnp.int32)
    targets = jax.random.randint(kt, (B, T), 0, vocab_size, dtype=jnp.int32)

    fwd = jax.jit(functools.partial(
        char_rnn_forward, dims=(vocab_size, d_model, n_hidden)))

    # TODO(synk): retain_grad()/autograd hooks from the PyTorch module have no
    # Pallas equivalent; this kernel implements the forward pass only.
    logits, loss, interm_emb, interm_h = fwd(kparams, xb, targets)
    jax.block_until_ready((logits, loss, interm_emb, interm_h))

    ref_logits, ref_loss = _ref_forward(params, xb, targets)
    assert logits.shape == (B, T, vocab_size)
    assert interm_emb.shape == (B, T, d_model)
    assert interm_h.shape == (B, T, n_hidden)
    assert jnp.allclose(logits, ref_logits, atol=5e-2, rtol=5e-2)
    assert jnp.allclose(loss, ref_loss, atol=5e-2, rtol=5e-2)

    print("KERNEL_OK")
</pallas_src>

<mosaic_0001>
module attributes {stable_mosaic.version = 11 : i64} {
  func.func @char_rnn_kernel(%arg0: i32, %arg1: memref<16x1xi32, #tpu.memory_space<vmem>>, %arg2: memref<16x1xi32, #tpu.memory_space<vmem>>, %arg3: memref<128x128xf32, #tpu.memory_space<vmem>>, %arg4: memref<128x256xbf16, #tpu.memory_space<vmem>>, %arg5: memref<256x256xbf16, #tpu.memory_space<vmem>>, %arg6: memref<256x128xbf16, #tpu.memory_space<vmem>>, %arg7: memref<1x128xf32, #tpu.memory_space<vmem>>, %arg8: memref<1x256xf32, #tpu.memory_space<vmem>>, %arg9: memref<16x128xf32, #tpu.memory_space<vmem>>, %arg10: memref<16x256xf32, #tpu.memory_space<vmem>>, %arg11: memref<16x128xf32, #tpu.memory_space<vmem>>, %arg12: memref<1x1xf32, #tpu.memory_space<vmem>>) attributes {dimension_semantics = [#tpu.dimension_semantics<arbitrary>], iteration_bounds = array<i64: 1>, scalar_prefetch = 0 : i64, scratch_operands = 0 : i64, tpu.core_type = #tpu.core_type<tc>, window_params = [{pipeline_mode = #tpu.pipeline_mode<synchronous>, transform_indices = @transform_0, window_bounds = array<i64: 16, 1>}, {pipeline_mode = #tpu.pipeline_mode<synchronous>, transform_indices = @transform_1, window_bounds = array<i64: 16, 1>}, {pipeline_mode = #tpu.pipeline_mode<synchronous>, transform_indices = @transform_2, window_bounds = array<i64: 128, 128>}, {pipeline_mode = #tpu.pipeline_mode<synchronous>, transform_indices = @transform_3, window_bounds = array<i64: 128, 256>}, {pipeline_mode = #tpu.pipeline_mode<synchronous>, transform_indices = @transform_4, window_bounds = array<i64: 256, 256>}, {pipeline_mode = #tpu.pipeline_mode<synchronous>, transform_indices = @transform_5, window_bounds = array<i64: 256, 128>}, {pipeline_mode = #tpu.pipeline_mode<synchronous>, transform_indices = @transform_6, window_bounds = array<i64: 1, 128>}, {pipeline_mode = #tpu.pipeline_mode<synchronous>, transform_indices = @transform_7, window_bounds = array<i64: 1, 256>}, {pipeline_mode = #tpu.pipeline_mode<synchronous>, transform_indices = @transform_8, window_bounds = array<i64: 16, 128>}, {pipeline_mode = #tpu.pipeline_mode<synchronous>, transform_indices = @transform_9, window_bounds = array<i64: 16, 256>}, {pipeline_mode = #tpu.pipeline_mode<synchronous>, transform_indices = @transform_10, window_bounds = array<i64: 16, 128>}, {pipeline_mode = #tpu.pipeline_mode<synchronous>, transform_indices = @transform_11, window_bounds = array<i64: 1, 1>}]} {
    %c0 = arith.constant 0 : index
    %c0_0 = arith.constant 0 : index
    %0 = vector.load %arg1[%c0, %c0_0] : memref<16x1xi32, #tpu.memory_space<vmem>>, vector<16x1xi32>
    %1 = tpu.iota {dimensions = array<i32: 1>} : vector<16x128xi32>
    %2 = vector.broadcast %0 : vector<16x1xi32> to vector<16x128xi32>
    %3 = arith.cmpi eq, %1, %2 : vector<16x128xi32>
    %4 = arith.extui %3 : vector<16x128xi1> to vector<16x128xi32>
    %5 = arith.sitofp %4 : vector<16x128xi32> to vector<16x128xf32>
    %c0_1 = arith.constant 0 : index
    %c0_2 = arith.constant 0 : index
    %6 = vector.load %arg3[%c0_1, %c0_2] : memref<128x128xf32, #tpu.memory_space<vmem>>, vector<128x128xf32>
    %cst = arith.constant dense<0.000000e+00> : vector<16x128xf32>
    %7 = tpu.matmul %5, %6, %cst {dimension_numbers = #tpu.dot_dimension_numbers<[1], [0], [0], [1], [0, 0, 1, 1], [], []>, precision = #tpu.contract_precision<fp32>} : vector<16x128xf32>, vector<128x128xf32>, vector<16x128xf32> -> vector<16x128xf32>
    %c0_3 = arith.constant 0 : index
    %c0_4 = arith.constant 0 : index
    %8 = vector.load %arg9[%c0_3, %c0_4] : memref<16x128xf32, #tpu.memory_space<vmem>>, vector<16x128xf32>
    tpu.vector_store %arg9[%c0_3, %c0_4], %7 {strides = array<i32>} : memref<16x128xf32, #tpu.memory_space<vmem>>, vector<16x128xf32>,
    %9 = arith.truncf %5 : vector<16x128xf32> to vector<16x128xbf16>
    %c0_5 = arith.constant 0 : index
    %c0_6 = arith.constant 0 : index
    %10 = vector.load %arg4[%c0_5, %c0_6] : memref<128x256xbf16, #tpu.memory_space<vmem>>, vector<128x256xbf16>
    %cst_7 = arith.constant dense<0.000000e+00> : vector<16x256xf32>
    %11 = tpu.matmul %9, %10, %cst_7 {dimension_numbers = #tpu.dot_dimension_numbers<[1], [0], [0], [1], [0, 0, 1, 1], [], []>} : vector<16x128xbf16>, vector<128x256xbf16>, vector<16x256xf32> -> vector<16x256xf32>
    %c0_8 = arith.constant 0 : index
    %c0_9 = arith.constant 0 : index
    %12 = vector.load %arg8[%c0_8, %c0_9] : memref<1x256xf32, #tpu.memory_space<vmem>>, vector<1x256xf32>
    %13 = vector.shape_cast %12 : vector<1x256xf32> to vector<1x256xf32>
    %14 = vector.broadcast %13 : vector<1x256xf32> to vector<2x256xf32>
    %15 = vector.extract_strided_slice %11 {offsets = [0, 0], sizes = [2, 256], strides = [1, 1]} : vector<16x256xf32> to vector<2x256xf32>
    %16 = arith.truncf %14 : vector<2x256xf32> to vector<2x256xbf16>
    %c0_10 = arith.constant 0 : index
    %c0_11 = arith.constant 0 : index
    %17 = vector.load %arg5[%c0_10, %c0_11] : memref<256x256xbf16, #tpu.memory_space<vmem>>, vector<256x256xbf16>
    %cst_12 = arith.constant dense<0.000000e+00> : vector<2x256xf32>
    %18 = tpu.matmul %16, %17, %cst_12 {dimension_numbers = #tpu.dot_dimension_numbers<[1], [0], [0], [1], [0, 0, 1, 1], [], []>} : vector<2x256xbf16>, vector<256x256xbf16>, vector<2x256xf32> -> vector<2x256xf32>
    %19 = arith.addf %15, %18 : vector<2x256xf32>
    %20 = math.tanh %19 : vector<2x256xf32>
    %c0_13 = arith.constant 0 : index
    %c0_14 = arith.constant 0 : index
    %21 = vector.load %arg10[%c0_13, %c0_14] : memref<16x256xf32, #tpu.memory_space<vmem>>, vector<2x256xf32>
    tpu.vector_store %arg10[%c0_13, %c0_14], %20 {strides = array<i32>} : memref<16x256xf32, #tpu.memory_space<vmem>>, vector<2x256xf32>,
    %22 = vector.extract_strided_slice %11 {offsets = [2, 0], sizes = [2, 256], strides = [1, 1]} : vector<16x256xf32> to vector<2x256xf32>
    %23 = arith.truncf %20 : vector<2x256xf32> to vector<2x256xbf16>
    %c0_15 = arith.constant 0 : index
    %c0_16 = arith.constant 0 : index
    %24 = vector.load %arg5[%c0_15, %c0_16] : memref<256x256xbf16, #tpu.memory_space<vmem>>, vector<256x256xbf16>
    %cst_17 = arith.constant dense<0.000000e+00> : vector<2x256xf32>
    %25 = tpu.matmul %23, %24, %cst_17 {dimension_numbers = #tpu.dot_dimension_numbers<[1], [0], [0], [1], [0, 0, 1, 1], [], []>} : vector<2x256xbf16>, vector<256x256xbf16>, vector<2x256xf32> -> vector<2x256xf32>
    %26 = arith.addf %22, %25 : vector<2x256xf32>
    %27 = math.tanh %26 : vector<2x256xf32>
    %c2 = arith.constant 2 : index
    %c0_18 = arith.constant 0 : index
    %28 = vector.load %arg10[%c2, %c0_18] : memref<16x256xf32, #tpu.memory_space<vmem>>, vector<2x256xf32>
    tpu.vector_store %arg10[%c2, %c0_18], %27 {strides = array<i32>} : memref<16x256xf32, #tpu.memory_space<vmem>>, vector<2x256xf32>,
    %29 = vector.extract_strided_slice %11 {offsets = [4, 0], sizes = [2, 256], strides = [1, 1]} : vector<16x256xf32> to vector<2x256xf32>
    %30 = arith.truncf %27 : vector<2x256xf32> to vector<2x256xbf16>
    %c0_19 = arith.constant 0 : index
    %c0_20 = arith.constant 0 : index
    %31 = vector.load %arg5[%c0_19, %c0_20] : memref<256x256xbf16, #tpu.memory_space<vmem>>, vector<256x256xbf16>
    %cst_21 = arith.constant dense<0.000000e+00> : vector<2x256xf32>
    %32 = tpu.matmul %30, %31, %cst_21 {dimension_numbers = #tpu.dot_dimension_numbers<[1], [0], [0], [1], [0, 0, 1, 1], [], []>} : vector<2x256xbf16>, vector<256x256xbf16>, vector<2x256xf32> -> vector<2x256xf32>
    %33 = arith.addf %29, %32 : vector<2x256xf32>
    %34 = math.tanh %33 : vector<2x256xf32>
    %c4 = arith.constant 4 : index
    %c0_22 = arith.constant 0 : index
    %35 = vector.load %arg10[%c4, %c0_22] : memref<16x256xf32, #tpu.memory_space<vmem>>, vector<2x256xf32>
    tpu.vector_store %arg10[%c4, %c0_22], %34 {strides = array<i32>} : memref<16x256xf32, #tpu.memory_space<vmem>>, vector<2x256xf32>,
    %36 = vector.extract_strided_slice %11 {offsets = [6, 0], sizes = [2, 256], strides = [1, 1]} : vector<16x256xf32> to vector<2x256xf32>
    %37 = arith.truncf %34 : vector<2x256xf32> to vector<2x256xbf16>
    %c0_23 = arith.constant 0 : index
    %c0_24 = arith.constant 0 : index
    %38 = vector.load %arg5[%c0_23, %c0_24] : memref<256x256xbf16, #tpu.memory_space<vmem>>, vector<256x256xbf16>
    %cst_25 = arith.constant dense<0.000000e+00> : vector<2x256xf32>
    %39 = tpu.matmul %37, %38, %cst_25 {dimension_numbers = #tpu.dot_dimension_numbers<[1], [0], [0], [1], [0, 0, 1, 1], [], []>} : vector<2x256xbf16>, vector<256x256xbf16>, vector<2x256xf32> -> vector<2x256xf32>
    %40 = arith.addf %36, %39 : vector<2x256xf32>
    %41 = math.tanh %40 : vector<2x256xf32>
    %c6 = arith.constant 6 : index
    %c0_26 = arith.constant 0 : index
    %42 = vector.load %arg10[%c6, %c0_26] : memref<16x256xf32, #tpu.memory_space<vmem>>, vector<2x256xf32>
    tpu.vector_store %arg10[%c6, %c0_26], %41 {strides = array<i32>} : memref<16x256xf32, #tpu.memory_space<vmem>>, vector<2x256xf32>,
    %43 = vector.extract_strided_slice %11 {offsets = [8, 0], sizes = [2, 256], strides = [1, 1]} : vector<16x256xf32> to vector<2x256xf32>
    %44 = arith.truncf %41 : vector<2x256xf32> to vector<2x256xbf16>
    %c0_27 = arith.constant 0 : index
    %c0_28 = arith.constant 0 : index
    %45 = vector.load %arg5[%c0_27, %c0_28] : memref<256x256xbf16, #tpu.memory_space<vmem>>, vector<256x256xbf16>
    %cst_29 = arith.constant dense<0.000000e+00> : vector<2x256xf32>
    %46 = tpu.matmul %44, %45, %cst_29 {dimension_numbers = #tpu.dot_dimension_numbers<[1], [0], [0], [1], [0, 0, 1, 1], [], []>} : vector<2x256xbf16>, vector<256x256xbf16>, vector<2x256xf32> -> vector<2x256xf32>
    %47 = arith.addf %43, %46 : vector<2x256xf32>
    %48 = math.tanh %47 : vector<2x256xf32>
    %c8 = arith.constant 8 : index
    %c0_30 = arith.constant 0 : index
    %49 = vector.load %arg10[%c8, %c0_30] : memref<16x256xf32, #tpu.memory_space<vmem>>, vector<2x256xf32>
    tpu.vector_store %arg10[%c8, %c0_30], %48 {strides = array<i32>} : memref<16x256xf32, #tpu.memory_space<vmem>>, vector<2x256xf32>,
    %50 = vector.extract_strided_slice %11 {offsets = [10, 0], sizes = [2, 256], strides = [1, 1]} : vector<16x256xf32> to vector<2x256xf32>
    %51 = arith.truncf %48 : vector<2x256xf32> to vector<2x256xbf16>
    %c0_31 = arith.constant 0 : index
    %c0_32 = arith.constant 0 : index
    %52 = vector.load %arg5[%c0_31, %c0_32] : memref<256x256xbf16, #tpu.memory_space<vmem>>, vector<256x256xbf16>
    %cst_33 = arith.constant dense<0.000000e+00> : vector<2x256xf32>
    %53 = tpu.matmul %51, %52, %cst_33 {dimension_numbers = #tpu.dot_dimension_numbers<[1], [0], [0], [1], [0, 0, 1, 1], [], []>} : vector<2x256xbf16>, vector<256x256xbf16>, vector<2x256xf32> -> vector<2x256xf32>
    %54 = arith.addf %50, %53 : vector<2x256xf32>
    %55 = math.tanh %54 : vector<2x256xf32>
    %c10 = arith.constant 10 : index
    %c0_34 = arith.constant 0 : index
    %56 = vector.load %arg10[%c10, %c0_34] : memref<16x256xf32, #tpu.memory_space<vmem>>, vector<2x256xf32>
    tpu.vector_store %arg10[%c10, %c0_34], %55 {strides = array<i32>} : memref<16x256xf32, #tpu.memory_space<vmem>>, vector<2x256xf32>,
    %57 = vector.extract_strided_slice %11 {offsets = [12, 0], sizes = [2, 256], strides = [1, 1]} : vector<16x256xf32> to vector<2x256xf32>
    %58 = arith.truncf %55 : vector<2x256xf32> to vector<2x256xbf16>
    %c0_35 = arith.constant 0 : index
    %c0_36 = arith.constant 0 : index
    %59 = vector.load %arg5[%c0_35, %c0_36] : memref<256x256xbf16, #tpu.memory_space<vmem>>, vector<256x256xbf16>
    %cst_37 = arith.constant dense<0.000000e+00> : vector<2x256xf32>
    %60 = tpu.matmul %58, %59, %cst_37 {dimension_numbers = #tpu.dot_dimension_numbers<[1], [0], [0], [1], [0, 0, 1, 1], [], []>} : vector<2x256xbf16>, vector<256x256xbf16>, vector<2x256xf32> -> vector<2x256xf32>
    %61 = arith.addf %57, %60 : vector<2x256xf32>
    %62 = math.tanh %61 : vector<2x256xf32>
    %c12 = arith.constant 12 : index
    %c0_38 = arith.constant 0 : index
    %63 = vector.load %arg10[%c12, %c0_38] : memref<16x256xf32, #tpu.memory_space<vmem>>, vector<2x256xf32>
    tpu.vector_store %arg10[%c12, %c0_38], %62 {strides = array<i32>} : memref<16x256xf32, #tpu.memory_space<vmem>>, vector<2x256xf32>,
    %64 = vector.extract_strided_slice %11 {offsets = [14, 0], sizes = [2, 256], strides = [1, 1]} : vector<16x256xf32> to vector<2x256xf32>
    %65 = arith.truncf %62 : vector<2x256xf32> to vector<2x256xbf16>
    %c0_39 = arith.constant 0 : index
    %c0_40 = arith.constant 0 : index
    %66 = vector.load %arg5[%c0_39, %c0_40] : memref<256x256xbf16, #tpu.memory_space<vmem>>, vector<256x256xbf16>
    %cst_41 = arith.constant dense<0.000000e+00> : vector<2x256xf32>
    %67 = tpu.matmul %65, %66, %cst_41 {dimension_numbers = #tpu.dot_dimension_numbers<[1], [0], [0], [1], [0, 0, 1, 1], [], []>} : vector<2x256xbf16>, vector<256x256xbf16>, vector<2x256xf32> -> vector<2x256xf32>
    %68 = arith.addf %64, %67 : vector<2x256xf32>
    %69 = math.tanh %68 : vector<2x256xf32>
    %c14 = arith.constant 14 : index
    %c0_42 = arith.constant 0 : index
    %70 = vector.load %arg10[%c14, %c0_42] : memref<16x256xf32, #tpu.memory_space<vmem>>, vector<2x256xf32>
    tpu.vector_store %arg10[%c14, %c0_42], %69 {strides = array<i32>} : memref<16x256xf32, #tpu.memory_space<vmem>>, vector<2x256xf32>,
    %c0_43 = arith.constant 0 : index
    %c0_44 = arith.constant 0 : index
    %71 = vector.load %arg10[%c0_43, %c0_44] : memref<16x256xf32, #tpu.memory_space<vmem>>, vector<16x256xf32>
    %72 = arith.truncf %71 : vector<16x256xf32> to vector<16x256xbf16>
    %c0_45 = arith.constant 0 : index
    %c0_46 = arith.constant 0 : index
    %73 = vector.load %arg6[%c0_45, %c0_46] : memref<256x128xbf16, #tpu.memory_space<vmem>>, vector<256x128xbf16>
    %cst_47 = arith.constant dense<0.000000e+00> : vector<16x128xf32>
    %74 = tpu.matmul %72, %73, %cst_47 {dimension_numbers = #tpu.dot_dimension_numbers<[1], [0], [0], [1], [0, 0, 1, 1], [], []>} : vector<16x256xbf16>, vector<256x128xbf16>, vector<16x128xf32> -> vector<16x128xf32>
    %c0_48 = arith.constant 0 : index
    %c0_49 = arith.constant 0 : index
    %75 = vector.load %arg7[%c0_48, %c0_49] : memref<1x128xf32, #tpu.memory_space<vmem>>, vector<1x128xf32>
    %76 = vector.broadcast %75 : vector<1x128xf32> to vector<16x128xf32>
    %77 = arith.addf %74, %76 : vector<16x128xf32>
    %c0_50 = arith.constant 0 : index
    %c0_51 = arith.constant 0 : index
    %78 = vector.load %arg11[%c0_50, %c0_51] : memref<16x128xf32, #tpu.memory_space<vmem>>, vector<16x128xf32>
    tpu.vector_store %arg11[%c0_50, %c0_51], %77 {strides = array<i32>} : memref<16x128xf32, #tpu.memory_space<vmem>>, vector<16x128xf32>,
    %cst_52 = arith.constant dense<0xFF800000> : vector<16xf32>
    %79 = vector.multi_reduction <maximumf>, %77, %cst_52 [1] : vector<16x128xf32> to vector<16xf32>
    %80 = vector.shape_cast %79 : vector<16xf32> to vector<16x1xf32>
    %81 = vector.broadcast %80 : vector<16x1xf32> to vector<16x128xf32>
    %82 = arith.subf %77, %81 : vector<16x128xf32>
    %83 = math.exp %82 : vector<16x128xf32>
    %cst_53 = arith.constant dense<0.000000e+00> : vector<16xf32>
    %84 = vector.multi_reduction <add>, %83, %cst_53 [1] : vector<16x128xf32> to vector<16xf32>
    %85 = vector.shape_cast %84 : vector<16xf32> to vector<16x1xf32>
    %86 = math.log %85 : vector<16x1xf32>
    %87 = arith.addf %80, %86 : vector<16x1xf32>
    %c0_54 = arith.constant 0 : index
    %c0_55 = arith.constant 0 : index
    %88 = vector.load %arg2[%c0_54, %c0_55] : memref<16x1xi32, #tpu.memory_space<vmem>>, vector<16x1xi32>
    %89 = vector.broadcast %88 : vector<16x1xi32> to vector<16x128xi32>
    %90 = arith.cmpi eq, %1, %89 : vector<16x128xi32>
    %cst_56 = arith.constant 0.000000e+00 : f32
    %91 = vector.broadcast %cst_56 : f32 to vector<16x128xf32>
    %92 = arith.select %90, %77, %91 : vector<16x128xi1>, vector<16x128xf32>
    %cst_57 = arith.constant dense<0.000000e+00> : vector<16xf32>
    %93 = vector.multi_reduction <add>, %92, %cst_57 [1] : vector<16x128xf32> to vector<16xf32>
    %94 = vector.shape_cast %93 : vector<16xf32> to vector<16x1xf32>
    %95 = arith.subf %87, %94 : vector<16x1xf32>
    %96 = vector.shape_cast %95 : vector<16x1xf32> to vector<1x16x1xf32>
    %cst_58 = arith.constant dense<0.000000e+00> : vector<1xf32>
    %97 = vector.multi_reduction <add>, %96, %cst_58 [1, 2] : vector<1x16x1xf32> to vector<1xf32>
    %98 = vector.shape_cast %97 : vector<1xf32> to vector<1x1x1xf32>
    %99 = vector.extract %98[0, 0, 0] : f32 from vector<1x1x1xf32>
    %100 = vector.broadcast %99 : f32 to vector<1x1xf32>
    %cst_59 = arith.constant 6.250000e-02 : f32
    %101 = vector.broadcast %cst_59 : f32 to vector<1x1xf32>
    %102 = arith.mulf %100, %101 : vector<1x1xf32>
    %c0_60 = arith.constant 0 : index
    %c0_61 = arith.constant 0 : index
    %103 = vector.load %arg12[%c0_60, %c0_61] : memref<1x1xf32, #tpu.memory_space<vmem>>, vector<1x1xf32>
    tpu.vector_store %arg12[%c0_60, %c0_61], %102 {strides = array<i32>} : memref<1x1xf32, #tpu.memory_space<vmem>>, vector<1x1xf32>,
    return
  }
  func.func @transform_0(%arg0: i32) -> (i32, i32) {
    %c0_i32 = arith.constant 0 : i32
    %c0_i32_0 = arith.constant 0 : i32
    %c0_i32_1 = arith.constant 0 : i32
    return %c0_i32, %c0_i32_0 : i32, i32
  }
  func.func @transform_1(%arg0: i32) -> (i32, i32) {
    %c0_i32 = arith.constant 0 : i32
    %c0_i32_0 = arith.constant 0 : i32
    %c0_i32_1 = arith.constant 0 : i32
    return %c0_i32, %c0_i32_0 : i32, i32
  }
  func.func @transform_2(%arg0: i32) -> (i32, i32) {
    %c0_i32 = arith.constant 0 : i32
    %c0_i32_0 = arith.constant 0 : i32
    %c0_i32_1 = arith.constant 0 : i32
    return %c0_i32, %c0_i32_0 : i32, i32
  }
  func.func @transform_3(%arg0: i32) -> (i32, i32) {
    %c0_i32 = arith.constant 0 : i32
    %c0_i32_0 = arith.constant 0 : i32
    %c0_i32_1 = arith.constant 0 : i32
    return %c0_i32, %c0_i32_0 : i32, i32
  }
  func.func @transform_4(%arg0: i32) -> (i32, i32) {
    %c0_i32 = arith.constant 0 : i32
    %c0_i32_0 = arith.constant 0 : i32
    %c0_i32_1 = arith.constant 0 : i32
    return %c0_i32, %c0_i32_0 : i32, i32
  }
  func.func @transform_5(%arg0: i32) -> (i32, i32) {
    %c0_i32 = arith.constant 0 : i32
    %c0_i32_0 = arith.constant 0 : i32
    %c0_i32_1 = arith.constant 0 : i32
    return %c0_i32, %c0_i32_0 : i32, i32
  }
  func.func @transform_6(%arg0: i32) -> (i32, i32) {
    %c0_i32 = arith.constant 0 : i32
    %c0_i32_0 = arith.constant 0 : i32
    %c0_i32_1 = arith.constant 0 : i32
    return %c0_i32, %c0_i32_0 : i32, i32
  }
  func.func @transform_7(%arg0: i32) -> (i32, i32) {
    %c0_i32 = arith.constant 0 : i32
    %c0_i32_0 = arith.constant 0 : i32
    %c0_i32_1 = arith.constant 0 : i32
    return %c0_i32, %c0_i32_0 : i32, i32
  }
  func.func @transform_8(%arg0: i32) -> (i32, i32) {
    %c0_i32 = arith.constant 0 : i32
    %c0_i32_0 = arith.constant 0 : i32
    %c0_i32_1 = arith.constant 0 : i32
    return %c0_i32, %c0_i32_0 : i32, i32
  }
  func.func @transform_9(%arg0: i32) -> (i32, i32) {
    %c0_i32 = arith.constant 0 : i32
    %c0_i32_0 = arith.constant 0 : i32
    %c0_i32_1 = arith.constant 0 : i32
    return %c0_i32, %c0_i32_0 : i32, i32
  }
  func.func @transform_10(%arg0: i32) -> (i32, i32) {
    %c0_i32 = arith.constant 0 : i32
    %c0_i32_0 = arith.constant 0 : i32
    %c0_i32_1 = arith.constant 0 : i32
    return %c0_i32, %c0_i32_0 : i32, i32
  }
  func.func @transform_11(%arg0: i32) -> (i32, i32) {
    %c0_i32 = arith.constant 0 : i32
    %c0_i32_0 = arith.constant 0 : i32
    %c0_i32_1 = arith.constant 0 : i32
    return %c0_i32, %c0_i32_0 : i32, i32
  }
}

</mosaic_0001>

<llo_original>
// kernel: char_rnn_forward.1
$region0: #{char_rnn_forward.1}
  #allocation0 [shape = 'u32[]', space=smem, size = 0x4, offset = 0x4, fixed_abs, tag = 'smem constant byte address 0x4 - core index']
  #allocation1 [shape = 'u32[72,128]{1,0:T(1,128)}', space=vmem, size = 0x9000, scoped, tag = 'internal scratch']
  %s0 = inlined_call_operand.vmem [shape: s32[16,1], index: 0, kind: input, shape index: {}]
  %s1 = inlined_call_operand.vmem [shape: s32[16,1], index: 1, kind: input, shape index: {}]
  %s2 = inlined_call_operand.hbm [shape: f32[128,128], index: 2, kind: input, shape index: {}]
  %s3 = inlined_call_operand.hbm [shape: bf16[128,256], index: 3, kind: input, shape index: {}]
  %s4 = inlined_call_operand.hbm [shape: bf16[256,256], index: 4, kind: input, shape index: {}]
  %s5 = inlined_call_operand.hbm [shape: bf16[256,128], index: 5, kind: input, shape index: {}]
  %s6 = inlined_call_operand.vmem [shape: f32[1,128], index: 6, kind: input, shape index: {}]
  %s7 = inlined_call_operand.vmem [shape: f32[1,256], index: 7, kind: input, shape index: {}]
  %s8 = inlined_call_operand.vmem [shape: f32[16,128], index: 8, kind: output, shape index: {0}]
  %s9 = inlined_call_operand.vmem [shape: f32[16,256], index: 9, kind: output, shape index: {1}]
  %s10 = inlined_call_operand.vmem [shape: f32[16,128], index: 10, kind: output, shape index: {2}]
  %s11 = inlined_call_operand.hbm [shape: f32[1,1], index: 11, kind: output, shape index: {3}]
  %12 = xla_tuple %s8, %s9, %s10, %s11
  %s13 = sld [smem:[#allocation0]]
  $region82: #{char_rnn_forward.1} parent=0
    _
  %s15 = ssub.s32 1, %s13
  %s16 = scalar_select 0, %s15, %s13
  $region1: #{char_rnn_forward.1} parent=0
    #allocation2 [shape = 'u8[65536]{0}', space=vmem, size = 0x10000, scoped, tag = 'input window, operand 2, single buffered']
    #allocation3 [shape = 's32[1]{0}', space=sflag, size = 0x4, scoped, tag = 'scoped memory for char_rnn_forward.1']
    #allocation4 [shape = 's32[1]{0}', space=sflag, size = 0x4, scoped, tag = 'scoped memory for char_rnn_forward.1']
    #allocation5 [shape = 'u8[65536]{0}', space=vmem, size = 0x10000, scoped, tag = 'input window, operand 3, single buffered']
    #allocation6 [shape = 's32[1]{0}', space=sflag, size = 0x4, scoped, tag = 'scoped memory for char_rnn_forward.1']
    #allocation7 [shape = 'u8[131072]{0}', space=vmem, size = 0x20000, scoped, tag = 'input window, operand 4, single buffered']
    #allocation8 [shape = 'u8[65536]{0}', space=vmem, size = 0x10000, scoped, tag = 'input window, operand 5, single buffered']
    #allocation9 [shape = 's32[1]{0}', space=sflag, size = 0x4, scoped, tag = 'scoped memory for char_rnn_forward.1']
    #allocation10 [shape = 'u8[512]{0}', space=vmem, size = 0x400, scoped, tag = 'output window, operand 3, single buffered']
    %17 = vsyncpa [#allocation3], 0
    %18 = vsyncpa [#allocation6], 0
    %19 = vsyncpa [#allocation9], 0
    %20 = vsyncpa [#allocation4], 0
    // Predicated region
    $region2: #{char_rnn_forward.1} parent=1 // pred_check
      _
    $region3: #{char_rnn_forward.1} parent=1 // pred_check_branch
      %22 = sbr.rel (0) target = $region5
    $region4: #{char_rnn_forward.1} parent=1 // pred_region
      _
    $region5: #{char_rnn_forward.1} parent=1 // pred_fallthru
      _
    // Predicated region
    $region6: #{char_rnn_forward.1} parent=1 // pred_check
      _
    $region7: #{char_rnn_forward.1} parent=1 // pred_check_branch
      %24 = sbr.rel (0) target = $region9
    $region8: #{char_rnn_forward.1} parent=1 // pred_region
      _
    $region9: #{char_rnn_forward.1} parent=1 // pred_fallthru
      _
    // Predicated region
    $region10: #{char_rnn_forward.1} parent=1 // pred_check
      _
    $region11: #{char_rnn_forward.1} parent=1 // pred_check_branch
      %26 = sbr.rel (0) target = $region13
    $region12: #{char_rnn_forward.1} parent=1 // pred_region
      %28 = vsyncadd [#allocation3], 0
      %s29 = sshll.u32 %s2, 4
      %s30 = int_to_ptr.hbm [resolvable:$true] %s29
      %s31 = sshll.u32 [#allocation2], 4
      %s32 = int_to_ptr.vmem [resolvable:$true] %s31
      %37 = dma.hbm_to_vmem [thread:$0]  %s30, 2048, %s32, [#allocation3], 128, 128, 8
    $region13: #{char_rnn_forward.1} parent=1 // pred_fallthru
      _
    // Predicated region
    $region14: #{char_rnn_forward.1} parent=1 // pred_check
      _
    $region15: #{char_rnn_forward.1} parent=1 // pred_check_branch
      %39 = sbr.rel (0) target = $region17
    $region16: #{char_rnn_forward.1} parent=1 // pred_region
      %41 = vsyncadd [#allocation6], 0
      %s42 = sshll.u32 %s3, 4
      %s43 = int_to_ptr.hbm [resolvable:$true] %s42
      %s44 = sshll.u32 [#allocation5], 4
      %s45 = int_to_ptr.vmem [resolvable:$true] %s44
      %50 = dma.hbm_to_vmem [thread:$0]  %s43, 2048, %s45, [#allocation6], 128, 128, 8
    $region17: #{char_rnn_forward.1} parent=1 // pred_fallthru
      _
    // Predicated region
    $region18: #{char_rnn_forward.1} parent=1 // pred_check
      _
    $region19: #{char_rnn_forward.1} parent=1 // pred_check_branch
      %52 = sbr.rel (0) target = $region21
    $region20: #{char_rnn_forward.1} parent=1 // pred_region
      %54 = vsyncadd [#allocation6], 0
      %s55 = sshll.u32 %s4, 4
      %s56 = int_to_ptr.hbm [resolvable:$true] %s55
      %s57 = sshll.u32 [#allocation7], 4
      %s58 = int_to_ptr.vmem [resolvable:$true] %s57
      %63 = dma.hbm_to_vmem [thread:$0]  %s56, 4096, %s58, [#allocation6], 128, 128, 8
    $region21: #{char_rnn_forward.1} parent=1 // pred_fallthru
      _
    // Predicated region
    $region22: #{char_rnn_forward.1} parent=1 // pred_check
      _
    $region23: #{char_rnn_forward.1} parent=1 // pred_check_branch
      %65 = sbr.rel (0) target = $region25
    $region24: #{char_rnn_forward.1} parent=1 // pred_region
      %67 = vsyncadd [#allocation9], 0
      %s68 = sshll.u32 %s5, 4
      %s69 = int_to_ptr.hbm [resolvable:$true] %s68
      %s70 = sshll.u32 [#allocation8], 4
      %s71 = int_to_ptr.vmem [resolvable:$true] %s70
      %76 = dma.hbm_to_vmem [thread:$0]  %s69, 2048, %s71, [#allocation9], 64, 64, 4
    $region25: #{char_rnn_forward.1} parent=1 // pred_fallthru
      _
    // Predicated region
    $region26: #{char_rnn_forward.1} parent=1 // pred_check
      _
    $region27: #{char_rnn_forward.1} parent=1 // pred_check_branch
      %78 = sbr.rel (0) target = $region29
    $region28: #{char_rnn_forward.1} parent=1 // pred_region
      _
    $region29: #{char_rnn_forward.1} parent=1 // pred_fallthru
      _
    // Predicated region
    $region30: #{char_rnn_forward.1} parent=1 // pred_check
      _
    $region31: #{char_rnn_forward.1} parent=1 // pred_check_branch
      %80 = sbr.rel (0) target = $region33
    $region32: #{char_rnn_forward.1} parent=1 // pred_region
      _
    $region33: #{char_rnn_forward.1} parent=1 // pred_fallthru
      _
    // Predicated region
    $region34: #{char_rnn_forward.1} parent=1 // pred_check
      _
    $region35: #{char_rnn_forward.1} parent=1 // pred_check_branch
      %82 = sbr.rel (0) target = $region37
    $region36: #{char_rnn_forward.1} parent=1 // pred_region
      %84 = dma.done [#allocation3], 2048
    $region37: #{char_rnn_forward.1} parent=1 // pred_fallthru
      _
    // Predicated region
    $region38: #{char_rnn_forward.1} parent=1 // pred_check
      _
    $region39: #{char_rnn_forward.1} parent=1 // pred_check_branch
      %86 = sbr.rel (0) target = $region41
    $region40: #{char_rnn_forward.1} parent=1 // pred_region
      %88 = dma.done [#allocation6], 2048
    $region41: #{char_rnn_forward.1} parent=1 // pred_fallthru
      _
    // Predicated region
    $region42: #{char_rnn_forward.1} parent=1 // pred_check
      _
    $region43: #{char_rnn_forward.1} parent=1 // pred_check_branch
      %90 = sbr.rel (0) target = $region45
    $region44: #{char_rnn_forward.1} parent=1 // pred_region
      %92 = dma.done [#allocation6], 4096
    $region45: #{char_rnn_forward.1} parent=1 // pred_fallthru
      _
    // Predicated region
    $region46: #{char_rnn_forward.1} parent=1 // pred_check
      _
    $region47: #{char_rnn_forward.1} parent=1 // pred_check_branch
      %94 = sbr.rel (0) target = $region49
    $region48: #{char_rnn_forward.1} parent=1 // pred_region
      %96 = dma.done [#allocation9], 2048
    $region49: #{char_rnn_forward.1} parent=1 // pred_fallthru
      _
    %v97 = vld [vmem:[%s0] sm:$0xff]
    %v98 = vld [vmem:[%s0 + $0x8] sm:$0xff]
    %v99 = vlaneseq
    %v100 = vand.u32 %v99, 127
    %101 = vset.pattern.permute.xlu0 0
    %102 = vperm.xlu0 %101, %v97
    %v103 = vpop.permute.xlu0 %102
    %104 = vset.pattern.permute.xlu0 0
    %105 = vperm.xlu0 %104, %v98
    %v106 = vpop.permute.xlu0 %105
    %vm107 = vcmp.eq.s32.totalorder %v100, %v103
    %vm108 = vcmp.eq.s32.totalorder %v100, %v106
    %v109 = vsel %vm107, 1, 0
    %v110 = vsel %vm108, 1, 0
    %v111 = vcvt.s32.f32 %v109
    %v112 = vcvt.s32.f32 %v110
    %v113 = vld [vmem:[#allocation2] sm:$0xff]
    %v114 = vld [vmem:[#allocation2 + $0x8] sm:$0xff]
    %v115 = vld [vmem:[#allocation2 + $0x10] sm:$0xff]
    %v116 = vld [vmem:[#allocation2 + $0x18] sm:$0xff]
    %v117 = vld [vmem:[#allocation2 + $0x20] sm:$0xff]
    %v118 = vld [vmem:[#allocation2 + $0x28] sm:$0xff]
    %v119 = vld [vmem:[#allocation2 + $0x30] sm:$0xff]
    %v120 = vld [vmem:[#allocation2 + $0x38] sm:$0xff]
    %v121 = vld [vmem:[#allocation2 + $0x40] sm:$0xff]
    %v122 = vld [vmem:[#allocation2 + $0x48] sm:$0xff]
    %v123 = vld [vmem:[#allocation2 + $0x50] sm:$0xff]
    %v124 = vld [vmem:[#allocation2 + $0x58] sm:$0xff]
    %v125 = vld [vmem:[#allocation2 + $0x60] sm:$0xff]
    %v126 = vld [vmem:[#allocation2 + $0x68] sm:$0xff]
    %v127 = vld [vmem:[#allocation2 + $0x70] sm:$0xff]
    %v128 = vld [vmem:[#allocation2 + $0x78] sm:$0xff]
    %v129 = vand.u32 %v128, 4294901760
    %130 = vmatpush.msra.mxu0 %v129
    %v131 = vand.u32 %v127, 4294901760
    %132 = vmatpush.msra.mxu0 %v131
    %v133 = vand.u32 %v126, 4294901760
    %134 = vmatpush.msra.mxu0 %v133
    %v135 = vand.u32 %v125, 4294901760
    %136 = vmatpush.msra.mxu0 %v135
    %v137 = vand.u32 %v124, 4294901760
    %138 = vmatpush.msra.mxu0 %v137
    %v139 = vand.u32 %v123, 4294901760
    %140 = vmatpush.msra.mxu0 %v139
    %v141 = vand.u32 %v122, 4294901760
    %142 = vmatpush.msra.mxu0 %v141
    %v143 = vand.u32 %v121, 4294901760
    %144 = vmatpush.msra.mxu0 %v143
    %v145 = vand.u32 %v120, 4294901760
    %146 = vmatpush.msra.mxu0 %v145
    %v147 = vand.u32 %v119, 4294901760
    %148 = vmatpush.msra.mxu0 %v147
    %v149 = vand.u32 %v118, 4294901760
    %150 = vmatpush.msra.mxu0 %v149
    %v151 = vand.u32 %v117, 4294901760
    %152 = vmatpush.msra.mxu0 %v151
    %v153 = vand.u32 %v116, 4294901760
    %154 = vmatpush.msra.mxu0 %v153
    %v155 = vand.u32 %v115, 4294901760
    %156 = vmatpush.msra.mxu0 %v155
    %v157 = vand.u32 %v114, 4294901760
    %158 = vmatpush.msra.mxu0 %v157
    %v159 = vand.u32 %v113, 4294901760
    %160 = vmatpush.msra.mxu0 %v159
    %v161 = vand.u32 %v111, 4294901760
    %v162 = vsub.f32 %v111, %v161
    %v163 = vand.u32 %v162, 4294901760
    %v164 = vsub.f32 %v162, %v163
    %v165 = vand.u32 %v164, 4294901760
    %166 = vmatmul.f32.gmra.mxu0 %v165
    %v167 = vpop.f32.mrf.mxu0
    %v168 = vadd.f32 0.0, %v167
    %v169 = vand.u32 %v112, 4294901760
    %v170 = vsub.f32 %v112, %v169
    %v171 = vand.u32 %v170, 4294901760
    %v172 = vsub.f32 %v170, %v171
    %v173 = vand.u32 %v172, 4294901760
    %174 = vmatmul.f32.gmra.mxu0 %v173
    %v175 = vpop.f32.mrf.mxu0
    %v176 = vadd.f32 0.0, %v175
    %177 = vdwg.mxu0
    %v178 = vand.u32 %v128, 4294901760
    %v179 = vsub.f32 %v128, %v178
    %v180 = vand.u32 %v179, 4294901760
    %v181 = vsub.f32 %v179, %v180
    %v182 = vand.u32 %v181, 4294901760
    %183 = vmatpush.msra.mxu0 %v182
    %v184 = vand.u32 %v127, 4294901760
    %v185 = vsub.f32 %v127, %v184
    %v186 = vand.u32 %v185, 4294901760
    %v187 = vsub.f32 %v185, %v186
    %v188 = vand.u32 %v187, 4294901760
    %189 = vmatpush.msra.mxu0 %v188
    %v190 = vand.u32 %v126, 4294901760
    %v191 = vsub.f32 %v126, %v190
    %v192 = vand.u32 %v191, 4294901760
    %v193 = vsub.f32 %v191, %v192
    %v194 = vand.u32 %v193, 4294901760
    %195 = vmatpush.msra.mxu0 %v194
    %v196 = vand.u32 %v125, 4294901760
    %v197 = vsub.f32 %v125, %v196
    %v198 = vand.u32 %v197, 4294901760
    %v199 = vsub.f32 %v197, %v198
    %v200 = vand.u32 %v199, 4294901760
    %201 = vmatpush.msra.mxu0 %v200
    %v202 = vand.u32 %v124, 4294901760
    %v203 = vsub.f32 %v124, %v202
    %v204 = vand.u32 %v203, 4294901760
    %v205 = vsub.f32 %v203, %v204
    %v206 = vand.u32 %v205, 4294901760
    %207 = vmatpush.msra.mxu0 %v206
    %v208 = vand.u32 %v123, 4294901760
    %v209 = vsub.f32 %v123, %v208
    %v210 = vand.u32 %v209, 4294901760
    %v211 = vsub.f32 %v209, %v210
    %v212 = vand.u32 %v211, 4294901760
    %213 = vmatpush.msra.mxu0 %v212
    %v214 = vand.u32 %v122, 4294901760
    %v215 = vsub.f32 %v122, %v214
    %v216 = vand.u32 %v215, 4294901760
    %v217 = vsub.f32 %v215, %v216
    %v218 = vand.u32 %v217, 4294901760
    %219 = vmatpush.msra.mxu0 %v218
    %v220 = vand.u32 %v121, 4294901760
    %v221 = vsub.f32 %v121, %v220
    %v222 = vand.u32 %v221, 4294901760
    %v223 = vsub.f32 %v221, %v222
    %v224 = vand.u32 %v223, 4294901760
    %225 = vmatpush.msra.mxu0 %v224
    %v226 = vand.u32 %v120, 4294901760
    %v227 = vsub.f32 %v120, %v226
    %v228 = vand.u32 %v227, 4294901760
    %v229 = vsub.f32 %v227, %v228
    %v230 = vand.u32 %v229, 4294901760
    %231 = vmatpush.msra.mxu0 %v230
    %v232 = vand.u32 %v119, 4294901760
    %v233 = vsub.f32 %v119, %v232
    %v234 = vand.u32 %v233, 4294901760
    %v235 = vsub.f32 %v233, %v234
    %v236 = vand.u32 %v235, 4294901760
    %237 = vmatpush.msra.mxu0 %v236
    %v238 = vand.u32 %v118, 4294901760
    %v239 = vsub.f32 %v118, %v238
    %v240 = vand.u32 %v239, 4294901760
    %v241 = vsub.f32 %v239, %v240
    %v242 = vand.u32 %v241, 4294901760
    %243 = vmatpush.msra.mxu0 %v242
    %v244 = vand.u32 %v117, 4294901760
    %v245 = vsub.f32 %v117, %v244
    %v246 = vand.u32 %v245, 4294901760
    %v247 = vsub.f32 %v245, %v246
    %v248 = vand.u32 %v247, 4294901760
    %249 = vmatpush.msra.mxu0 %v248
    %v250 = vand.u32 %v116, 4294901760
    %v251 = vsub.f32 %v116, %v250
    %v252 = vand.u32 %v251, 4294901760
    %v253 = vsub.f32 %v251, %v252
    %v254 = vand.u32 %v253, 4294901760
    %255 = vmatpush.msra.mxu0 %v254
    %v256 = vand.u32 %v115, 4294901760
    %v257 = vsub.f32 %v115, %v256
    %v258 = vand.u32 %v257, 4294901760
    %v259 = vsub.f32 %v257, %v258
    %v260 = vand.u32 %v259, 4294901760
    %261 = vmatpush.msra.mxu0 %v260
    %v262 = vand.u32 %v114, 4294901760
    %v263 = vsub.f32 %v114, %v262
    %v264 = vand.u32 %v263, 4294901760
    %v265 = vsub.f32 %v263, %v264
    %v266 = vand.u32 %v265, 4294901760
    %267 = vmatpush.msra.mxu0 %v266
    %v268 = vand.u32 %v113, 4294901760
    %v269 = vsub.f32 %v113, %v268
    %v270 = vand.u32 %v269, 4294901760
    %v271 = vsub.f32 %v269, %v270
    %v272 = vand.u32 %v271, 4294901760
    %273 = vmatpush.msra.mxu0 %v272
    %v274 = vand.u32 %v111, 4294901760
    %275 = vmatmul.f32.gmra.mxu0 %v274
    %v276 = vpop.f32.mrf.mxu0
    %v277 = vadd.f32 %v168, %v276
    %v278 = vand.u32 %v112, 4294901760
    %279 = vmatmul.f32.gmra.mxu0 %v278
    %v280 = vpop.f32.mrf.mxu0
    %v281 = vadd.f32 %v176, %v280
    %282 = vdwg.mxu0
    %v283 = vand.u32 %v128, 4294901760
    %v284 = vsub.f32 %v128, %v283
    %285 = vmatpush.msra.mxu0 %v284
    %v286 = vand.u32 %v127, 4294901760
    %v287 = vsub.f32 %v127, %v286
    %288 = vmatpush.msra.mxu0 %v287
    %v289 = vand.u32 %v126, 4294901760
    %v290 = vsub.f32 %v126, %v289
    %291 = vmatpush.msra.mxu0 %v290
    %v292 = vand.u32 %v125, 4294901760
    %v293 = vsub.f32 %v125, %v292
    %294 = vmatpush.msra.mxu0 %v293
    %v295 = vand.u32 %v124, 4294901760
    %v296 = vsub.f32 %v124, %v295
    %297 = vmatpush.msra.mxu0 %v296
    %v298 = vand.u32 %v123, 4294901760
    %v299 = vsub.f32 %v123, %v298
    %300 = vmatpush.msra.mxu0 %v299
    %v301 = vand.u32 %v122, 4294901760
    %v302 = vsub.f32 %v122, %v301
    %303 = vmatpush.msra.mxu0 %v302
    %v304 = vand.u32 %v121, 4294901760
    %v305 = vsub.f32 %v121, %v304
    %306 = vmatpush.msra.mxu0 %v305
    %v307 = vand.u32 %v120, 4294901760
    %v308 = vsub.f32 %v120, %v307
    %309 = vmatpush.msra.mxu0 %v308
    %v310 = vand.u32 %v119, 4294901760
    %v311 = vsub.f32 %v119, %v310
    %312 = vmatpush.msra.mxu0 %v311
    %v313 = vand.u32 %v118, 4294901760
    %v314 = vsub.f32 %v118, %v313
    %315 = vmatpush.msra.mxu0 %v314
    %v316 = vand.u32 %v117, 4294901760
    %v317 = vsub.f32 %v117, %v316
    %318 = vmatpush.msra.mxu0 %v317
    %v319 = vand.u32 %v116, 4294901760
    %v320 = vsub.f32 %v116, %v319
    %321 = vmatpush.msra.mxu0 %v320
    %v322 = vand.u32 %v115, 4294901760
    %v323 = vsub.f32 %v115, %v322
    %324 = vmatpush.msra.mxu0 %v323
    %v325 = vand.u32 %v114, 4294901760
    %v326 = vsub.f32 %v114, %v325
    %327 = vmatpush.msra.mxu0 %v326
    %v328 = vand.u32 %v113, 4294901760
    %v329 = vsub.f32 %v113, %v328
    %330 = vmatpush.msra.mxu0 %v329
    %v331 = vand.u32 %v111, 4294901760
    %v332 = vsub.f32 %v111, %v331
    %333 = vmatmul.f32.gmra.mxu0 %v332
    %v334 = vpop.f32.mrf.mxu0
    %v335 = vadd.f32 %v277, %v334
    %v336 = vand.u32 %v112, 4294901760
    %v337 = vsub.f32 %v112, %v336
    %338 = vmatmul.f32.gmra.mxu0 %v337
    %v339 = vpop.f32.mrf.mxu0
    %v340 = vadd.f32 %v281, %v339
    %341 = vdwg.mxu0
    %v342 = vand.u32 %v128, 4294901760
    %343 = vmatpush.msra.mxu0 %v342
    %v344 = vand.u32 %v127, 4294901760
    %345 = vmatpush.msra.mxu0 %v344
    %v346 = vand.u32 %v126, 4294901760
    %347 = vmatpush.msra.mxu0 %v346
    %v348 = vand.u32 %v125, 4294901760
    %349 = vmatpush.msra.mxu0 %v348
    %v350 = vand.u32 %v124, 4294901760
    %351 = vmatpush.msra.mxu0 %v350
    %v352 = vand.u32 %v123, 4294901760
    %353 = vmatpush.msra.mxu0 %v352
    %v354 = vand.u32 %v122, 4294901760
    %355 = vmatpush.msra.mxu0 %v354
    %v356 = vand.u32 %v121, 4294901760
    %357 = vmatpush.msra.mxu0 %v356
    %v358 = vand.u32 %v120, 4294901760
    %359 = vmatpush.msra.mxu0 %v358
    %v360 = vand.u32 %v119, 4294901760
    %361 = vmatpush.msra.mxu0 %v360
    %v362 = vand.u32 %v118, 4294901760
    %363 = vmatpush.msra.mxu0 %v362
    %v364 = vand.u32 %v117, 4294901760
    %365 = vmatpush.msra.mxu0 %v364
    %v366 = vand.u32 %v116, 4294901760
    %367 = vmatpush.msra.mxu0 %v366
    %v368 = vand.u32 %v115, 4294901760
    %369 = vmatpush.msra.mxu0 %v368
    %v370 = vand.u32 %v114, 4294901760
    %371 = vmatpush.msra.mxu0 %v370
    %v372 = vand.u32 %v113, 4294901760
    %373 = vmatpush.msra.mxu0 %v372
    %v374 = vand.u32 %v111, 4294901760
    %v375 = vsub.f32 %v111, %v374
    %v376 = vand.u32 %v375, 4294901760
    %377 = vmatmul.f32.gmra.mxu0 %v376
    %v378 = vpop.f32.mrf.mxu0
    %v379 = vadd.f32 %v335, %v378
    %v380 = vand.u32 %v112, 4294901760
    %v381 = vsub.f32 %v112, %v380
    %v382 = vand.u32 %v381, 4294901760
    %383 = vmatmul.f32.gmra.mxu0 %v382
    %v384 = vpop.f32.mrf.mxu0
    %v385 = vadd.f32 %v340, %v384
    %386 = vdwg.mxu0
    %v387 = vand.u32 %v128, 4294901760
    %v388 = vsub.f32 %v128, %v387
    %v389 = vand.u32 %v388, 4294901760
    %390 = vmatpush.msra.mxu0 %v389
    %v391 = vand.u32 %v127, 4294901760
    %v392 = vsub.f32 %v127, %v391
    %v393 = vand.u32 %v392, 4294901760
    %394 = vmatpush.msra.mxu0 %v393
    %v395 = vand.u32 %v126, 4294901760
    %v396 = vsub.f32 %v126, %v395
    %v397 = vand.u32 %v396, 4294901760
    %398 = vmatpush.msra.mxu0 %v397
    %v399 = vand.u32 %v125, 4294901760
    %v400 = vsub.f32 %v125, %v399
    %v401 = vand.u32 %v400, 4294901760
    %402 = vmatpush.msra.mxu0 %v401
    %v403 = vand.u32 %v124, 4294901760
    %v404 = vsub.f32 %v124, %v403
    %v405 = vand.u32 %v404, 4294901760
    %406 = vmatpush.msra.mxu0 %v405
    %v407 = vand.u32 %v123, 4294901760
    %v408 = vsub.f32 %v123, %v407
    %v409 = vand.u32 %v408, 4294901760
    %410 = vmatpush.msra.mxu0 %v409
    %v411 = vand.u32 %v122, 4294901760
    %v412 = vsub.f32 %v122, %v411
    %v413 = vand.u32 %v412, 4294901760
    %414 = vmatpush.msra.mxu0 %v413
    %v415 = vand.u32 %v121, 4294901760
    %v416 = vsub.f32 %v121, %v415
    %v417 = vand.u32 %v416, 4294901760
    %418 = vmatpush.msra.mxu0 %v417
    %v419 = vand.u32 %v120, 4294901760
    %v420 = vsub.f32 %v120, %v419
    %v421 = vand.u32 %v420, 4294901760
    %422 = vmatpush.msra.mxu0 %v421
    %v423 = vand.u32 %v119, 4294901760
    %v424 = vsub.f32 %v119, %v423
    %v425 = vand.u32 %v424, 4294901760
    %426 = vmatpush.msra.mxu0 %v425
    %v427 = vand.u32 %v118, 4294901760
    %v428 = vsub.f32 %v118, %v427
    %v429 = vand.u32 %v428, 4294901760
    %430 = vmatpush.msra.mxu0 %v429
    %v431 = vand.u32 %v117, 4294901760
    %v432 = vsub.f32 %v117, %v431
    %v433 = vand.u32 %v432, 4294901760
    %434 = vmatpush.msra.mxu0 %v433
    %v435 = vand.u32 %v116, 4294901760
    %v436 = vsub.f32 %v116, %v435
    %v437 = vand.u32 %v436, 4294901760
    %438 = vmatpush.msra.mxu0 %v437
    %v439 = vand.u32 %v115, 4294901760
    %v440 = vsub.f32 %v115, %v439
    %v441 = vand.u32 %v440, 4294901760
    %442 = vmatpush.msra.mxu0 %v441
    %v443 = vand.u32 %v114, 4294901760
    %v444 = vsub.f32 %v114, %v443
    %v445 = vand.u32 %v444, 4294901760
    %446 = vmatpush.msra.mxu0 %v445
    %v447 = vand.u32 %v113, 4294901760
    %v448 = vsub.f32 %v113, %v447
    %v449 = vand.u32 %v448, 4294901760
    %450 = vmatpush.msra.mxu0 %v449
    %v451 = vand.u32 %v111, 4294901760
    %452 = vmatmul.f32.gmra.mxu0 %v451
    %v453 = vpop.f32.mrf.mxu0
    %v454 = vadd.f32 %v379, %v453
    %v455 = vand.u32 %v112, 4294901760
    %456 = vmatmul.f32.gmra.mxu0 %v455
    %v457 = vpop.f32.mrf.mxu0
    %v458 = vadd.f32 %v385, %v457
    %459 = vdwg.mxu0
    %v460 = vand.u32 %v128, 4294901760
    %461 = vmatpush.msra.mxu0 %v460
    %v462 = vand.u32 %v127, 4294901760
    %463 = vmatpush.msra.mxu0 %v462
    %v464 = vand.u32 %v126, 4294901760
    %465 = vmatpush.msra.mxu0 %v464
    %v466 = vand.u32 %v125, 4294901760
    %467 = vmatpush.msra.mxu0 %v466
    %v468 = vand.u32 %v124, 4294901760
    %469 = vmatpush.msra.mxu0 %v468
    %v470 = vand.u32 %v123, 4294901760
    %471 = vmatpush.msra.mxu0 %v470
    %v472 = vand.u32 %v122, 4294901760
    %473 = vmatpush.msra.mxu0 %v472
    %v474 = vand.u32 %v121, 4294901760
    %475 = vmatpush.msra.mxu0 %v474
    %v476 = vand.u32 %v120, 4294901760
    %477 = vmatpush.msra.mxu0 %v476
    %v478 = vand.u32 %v119, 4294901760
    %479 = vmatpush.msra.mxu0 %v478
    %v480 = vand.u32 %v118, 4294901760
    %481 = vmatpush.msra.mxu0 %v480
    %v482 = vand.u32 %v117, 4294901760
    %483 = vmatpush.msra.mxu0 %v482
    %v484 = vand.u32 %v116, 4294901760
    %485 = vmatpush.msra.mxu0 %v484
    %v486 = vand.u32 %v115, 4294901760
    %487 = vmatpush.msra.mxu0 %v486
    %v488 = vand.u32 %v114, 4294901760
    %489 = vmatpush.msra.mxu0 %v488
    %v490 = vand.u32 %v113, 4294901760
    %491 = vmatpush.msra.mxu0 %v490
    %v492 = vand.u32 %v111, 4294901760
    %493 = vmatmul.f32.gmra.mxu0 %v492
    %v494 = vpop.f32.mrf.mxu0
    %v495 = vadd.f32 %v454, %v494
    %v496 = vand.u32 %v112, 4294901760
    %497 = vmatmul.f32.gmra.mxu0 %v496
    %v498 = vpop.f32.mrf.mxu0
    %v499 = vadd.f32 %v458, %v498
    %500 = vdwg.mxu0
    %501 = vst [vmem:[%s8] sm:$0xff] %v495
    %502 = vst [vmem:[%s8 + $0x8] sm:$0xff] %v499
    %v503 = vpack.c.bf16 %v112, %v111
    %v504 = vld [vmem:[#allocation5] sm:$0xff]
    %v505 = vld [vmem:[#allocation5 + $0x8] sm:$0xff]
    %v506 = vld [vmem:[#allocation5 + $0x10] sm:$0xff]
    %v507 = vld [vmem:[#allocation5 + $0x18] sm:$0xff]
    %v508 = vld [vmem:[#allocation5 + $0x20] sm:$0xff]
    %v509 = vld [vmem:[#allocation5 + $0x28] sm:$0xff]
    %v510 = vld [vmem:[#allocation5 + $0x30] sm:$0xff]
    %v511 = vld [vmem:[#allocation5 + $0x38] sm:$0xff]
    %v512 = vld [vmem:[#allocation5 + $0x40] sm:$0xff]
    %v513 = vld [vmem:[#allocation5 + $0x48] sm:$0xff]
    %v514 = vld [vmem:[#allocation5 + $0x50] sm:$0xff]
    %v515 = vld [vmem:[#allocation5 + $0x58] sm:$0xff]
    %v516 = vld [vmem:[#allocation5 + $0x60] sm:$0xff]
    %v517 = vld [vmem:[#allocation5 + $0x68] sm:$0xff]
    %v518 = vld [vmem:[#allocation5 + $0x70] sm:$0xff]
    %v519 = vld [vmem:[#allocation5 + $0x78] sm:$0xff]
    %v536 = vunpack.c.l.b16 %v504
    %v537 = vunpack.c.h.b16 %v504
    %v538 = vunpack.c.l.b16 %v505
    %v539 = vunpack.c.h.b16 %v505
    %v540 = vunpack.c.l.b16 %v506
    %v541 = vunpack.c.h.b16 %v506
    %v542 = vunpack.c.l.b16 %v507
    %v543 = vunpack.c.h.b16 %v507
    %v544 = vunpack.c.l.b16 %v508
    %v545 = vunpack.c.h.b16 %v508
    %v546 = vunpack.c.l.b16 %v509
    %v547 = vunpack.c.h.b16 %v509
    %v548 = vunpack.c.l.b16 %v510
    %v549 = vunpack.c.h.b16 %v510
    %v550 = vunpack.c.l.b16 %v511
    %v551 = vunpack.c.h.b16 %v511
    %v552 = vunpack.c.l.b16 %v512
    %v553 = vunpack.c.h.b16 %v512
    %v554 = vunpack.c.l.b16 %v513
    %v555 = vunpack.c.h.b16 %v513
    %v556 = vunpack.c.l.b16 %v514
    %v557 = vunpack.c.h.b16 %v514
    %v558 = vunpack.c.l.b16 %v515
    %v559 = vunpack.c.h.b16 %v515
    %v560 = vunpack.c.l.b16 %v516
    %v561 = vunpack.c.h.b16 %v516
    %v562 = vunpack.c.l.b16 %v517
    %v563 = vunpack.c.h.b16 %v517
    %v564 = vunpack.c.l.b16 %v518
    %v565 = vunpack.c.h.b16 %v518
    %v566 = vunpack.c.l.b16 %v519
    %v567 = vunpack.c.h.b16 %v519
    %v568 = vpack.c.b16 %v538, %v536
    %v569 = vpack.c.b16 %v539, %v537
    %v570 = vpack.c.b16 %v542, %v540
    %v571 = vpack.c.b16 %v543, %v541
    %v572 = vpack.c.b16 %v546, %v544
    %v573 = vpack.c.b16 %v547, %v545
    %v574 = vpack.c.b16 %v550, %v548
    %v575 = vpack.c.b16 %v551, %v549
    %v576 = vpack.c.b16 %v554, %v552
    %v577 = vpack.c.b16 %v555, %v553
    %v578 = vpack.c.b16 %v558, %v556
    %v579 = vpack.c.b16 %v559, %v557
    %v580 = vpack.c.b16 %v562, %v560
    %v581 = vpack.c.b16 %v563, %v561
    %v582 = vpack.c.b16 %v566, %v564
    %v583 = vpack.c.b16 %v567, %v565
    %600 = vmatpush.bf16.msra.mxu0 %v582
    %601 = vmatpush.bf16.msra.mxu0 %v580
    %602 = vmatpush.bf16.msra.mxu0 %v578
    %603 = vmatpush.bf16.msra.mxu0 %v576
    %604 = vmatpush.bf16.msra.mxu0 %v574
    %605 = vmatpush.bf16.msra.mxu0 %v572
    %606 = vmatpush.bf16.msra.mxu0 %v570
    %607 = vmatpush.bf16.msra.mxu0 %v568
    %608 = vmatmul.bf16.gmra.mxu0 %v503
    %v609 = vpop.f32.mrf.mxu0
    %v610 = vadd.f32 0.0, %v609
    %v611 = vpop.f32.mrf.mxu0
    %v612 = vadd.f32 0.0, %v611
    %613 = vdwg.mxu0
    %614 = vmatpush.bf16.msra.mxu0 %v583
    %615 = vmatpush.bf16.msra.mxu0 %v581
    %616 = vmatpush.bf16.msra.mxu0 %v579
    %617 = vmatpush.bf16.msra.mxu0 %v577
    %618 = vmatpush.bf16.msra.mxu0 %v575
    %619 = vmatpush.bf16.msra.mxu0 %v573
    %620 = vmatpush.bf16.msra.mxu0 %v571
    %621 = vmatpush.bf16.msra.mxu0 %v569
    %622 = vmatmul.bf16.gmra.mxu0 %v503
    %v623 = vpop.f32.mrf.mxu0
    %v624 = vadd.f32 0.0, %v623
    %v625 = vpop.f32.mrf.mxu0
    %v626 = vadd.f32 0.0, %v625
    %627 = vdwg.mxu0
    %v628 = vld [vmem:[%s7] sm:$0x3]
    %v630 = vperm.slane %v628, 0
    %v631 = vperm.slane %v628, 1
    %v634 = vpack.c.bf16 %v630, %v630
    %v635 = vpack.c.bf16 %v631, %v631
    %v636 = vld [vmem:[#allocation7] sm:$0xff]
    %v637 = vld [vmem:[#allocation7 + $0x8] sm:$0xff]
    %v638 = vld [vmem:[#allocation7 + $0x10] sm:$0xff]
    %v639 = vld [vmem:[#allocation7 + $0x18] sm:$0xff]
    %v640 = vld [vmem:[#allocation7 + $0x20] sm:$0xff]
    %v641 = vld [vmem:[#allocation7 + $0x28] sm:$0xff]
    %v642 = vld [vmem:[#allocation7 + $0x30] sm:$0xff]
    %v643 = vld [vmem:[#allocation7 + $0x38] sm:$0xff]
    %v644 = vld [vmem:[#allocation7 + $0x40] sm:$0xff]
    %v645 = vld [vmem:[#allocation7 + $0x48] sm:$0xff]
    %v646 = vld [vmem:[#allocation7 + $0x50] sm:$0xff]
    %v647 = vld [vmem:[#allocation7 + $0x58] sm:$0xff]
    %v648 = vld [vmem:[#allocation7 + $0x60] sm:$0xff]
    %v649 = vld [vmem:[#allocation7 + $0x68] sm:$0xff]
    %v650 = vld [vmem:[#allocation7 + $0x70] sm:$0xff]
    %v651 = vld [vmem:[#allocation7 + $0x78] sm:$0xff]
    %v652 = vld [vmem:[#allocation7 + $0x80] sm:$0xff]
    %v653 = vld [vmem:[#allocation7 + $0x88] sm:$0xff]
    %v654 = vld [vmem:[#allocation7 + $0x90] sm:$0xff]
    %v655 = vld [vmem:[#allocation7 + $0x98] sm:$0xff]
    %v656 = vld [vmem:[#allocation7 + $0xa0] sm:$0xff]
    %v657 = vld [vmem:[#allocation7 + $0xa8] sm:$0xff]
    %v658 = vld [vmem:[#allocation7 + $0xb0] sm:$0xff]
    %v659 = vld [vmem:[#allocation7 + $0xb8] sm:$0xff]
    %v660 = vld [vmem:[#allocation7 + $0xc0] sm:$0xff]
    %v661 = vld [vmem:[#allocation7 + $0xc8] sm:$0xff]
    %v662 = vld [vmem:[#allocation7 + $0xd0] sm:$0xff]
    %v663 = vld [vmem:[#allocation7 + $0xd8] sm:$0xff]
    %v664 = vld [vmem:[#allocation7 + $0xe0] sm:$0xff]
    %v665 = vld [vmem:[#allocation7 + $0xe8] sm:$0xff]
    %v666 = vld [vmem:[#allocation7 + $0xf0] sm:$0xff]
    %v667 = vld [vmem:[#allocation7 + $0xf8] sm:$0xff]
    %v700 = vunpack.c.l.b16 %v636
    %v701 = vunpack.c.h.b16 %v636
    %v702 = vunpack.c.l.b16 %v637
    %v703 = vunpack.c.h.b16 %v637
    %v704 = vunpack.c.l.b16 %v638
    %v705 = vunpack.c.h.b16 %v638
    %v706 = vunpack.c.l.b16 %v639
    %v707 = vunpack.c.h.b16 %v639
    %v708 = vunpack.c.l.b16 %v640
    %v709 = vunpack.c.h.b16 %v640
    %v710 = vunpack.c.l.b16 %v641
    %v711 = vunpack.c.h.b16 %v641
    %v712 = vunpack.c.l.b16 %v642
    %v713 = vunpack.c.h.b16 %v642
    %v714 = vunpack.c.l.b16 %v643
    %v715 = vunpack.c.h.b16 %v643
    %v716 = vunpack.c.l.b16 %v644
    %v717 = vunpack.c.h.b16 %v644
    %v718 = vunpack.c.l.b16 %v645
    %v719 = vunpack.c.h.b16 %v645
    %v720 = vunpack.c.l.b16 %v646
    %v721 = vunpack.c.h.b16 %v646
    %v722 = vunpack.c.l.b16 %v647
    %v723 = vunpack.c.h.b16 %v647
    %v724 = vunpack.c.l.b16 %v648
    %v725 = vunpack.c.h.b16 %v648
    %v726 = vunpack.c.l.b16 %v649
    %v727 = vunpack.c.h.b16 %v649
    %v728 = vunpack.c.l.b16 %v650
    %v729 = vunpack.c.h.b16 %v650
    %v730 = vunpack.c.l.b16 %v651
    %v731 = vunpack.c.h.b16 %v651
    %v732 = vunpack.c.l.b16 %v652
    %v733 = vunpack.c.h.b16 %v652
    %v734 = vunpack.c.l.b16 %v653
    %v735 = vunpack.c.h.b16 %v653
    %v736 = vunpack.c.l.b16 %v654
    %v737 = vunpack.c.h.b16 %v654
    %v738 = vunpack.c.l.b16 %v655
    %v739 = vunpack.c.h.b16 %v655
    %v740 = vunpack.c.l.b16 %v656
    %v741 = vunpack.c.h.b16 %v656
    %v742 = vunpack.c.l.b16 %v657
    %v743 = vunpack.c.h.b16 %v657
    %v744 = vunpack.c.l.b16 %v658
    %v745 = vunpack.c.h.b16 %v658
    %v746 = vunpack.c.l.b16 %v659
    %v747 = vunpack.c.h.b16 %v659
    %v748 = vunpack.c.l.b16 %v660
    %v749 = vunpack.c.h.b16 %v660
    %v750 = vunpack.c.l.b16 %v661
    %v751 = vunpack.c.h.b16 %v661
    %v752 = vunpack.c.l.b16 %v662
    %v753 = vunpack.c.h.b16 %v662
    %v754 = vunpack.c.l.b16 %v663
    %v755 = vunpack.c.h.b16 %v663
    %v756 = vunpack.c.l.b16 %v664
    %v757 = vunpack.c.h.b16 %v664
    %v758 = vunpack.c.l.b16 %v665
    %v759 = vunpack.c.h.b16 %v665
    %v760 = vunpack.c.l.b16 %v666
    %v761 = vunpack.c.h.b16 %v666
    %v762 = vunpack.c.l.b16 %v667
    %v763 = vunpack.c.h.b16 %v667
    %v764 = vpack.c.b16 %v702, %v700
    %v765 = vpack.c.b16 %v703, %v701
    %v766 = vpack.c.b16 %v706, %v704
    %v767 = vpack.c.b16 %v707, %v705
    %v768 = vpack.c.b16 %v710, %v708
    %v769 = vpack.c.b16 %v711, %v709
    %v770 = vpack.c.b16 %v714, %v712
    %v771 = vpack.c.b16 %v715, %v713
    %v772 = vpack.c.b16 %v718, %v716
    %v773 = vpack.c.b16 %v719, %v717
    %v774 = vpack.c.b16 %v722, %v720
    %v775 = vpack.c.b16 %v723, %v721
    %v776 = vpack.c.b16 %v726, %v724
    %v777 = vpack.c.b16 %v727, %v725
    %v778 = vpack.c.b16 %v730, %v728
    %v779 = vpack.c.b16 %v731, %v729
    %v780 = vpack.c.b16 %v734, %v732
    %v781 = vpack.c.b16 %v735, %v733
    %v782 = vpack.c.b16 %v738, %v736
    %v783 = vpack.c.b16 %v739, %v737
    %v784 = vpack.c.b16 %v742, %v740
    %v785 = vpack.c.b16 %v743, %v741
    %v786 = vpack.c.b16 %v746, %v744
    %v787 = vpack.c.b16 %v747, %v745
    %v788 = vpack.c.b16 %v750, %v748
    %v789 = vpack.c.b16 %v751, %v749
    %v790 = vpack.c.b16 %v754, %v752
    %v791 = vpack.c.b16 %v755, %v753
    %v792 = vpack.c.b16 %v758, %v756
    %v793 = vpack.c.b16 %v759, %v757
    %v794 = vpack.c.b16 %v762, %v760
    %v795 = vpack.c.b16 %v763, %v761
    %828 = vmatpush.bf16.msra.mxu0 %v778
    %829 = vmatpush.bf16.msra.mxu0 %v776
    %830 = vmatpush.bf16.msra.mxu0 %v774
    %831 = vmatpush.bf16.msra.mxu0 %v772
    %832 = vmatpush.bf16.msra.mxu0 %v770
    %833 = vmatpush.bf16.msra.mxu0 %v768
    %834 = vmatpush.bf16.msra.mxu0 %v766
    %835 = vmatpush.bf16.msra.mxu0 %v764
    %836 = vmatmul.bf16.gmra.mxu0 %v634
    %v837 = vpop.f32.mrf.mxu0
    %v838 = vadd.f32 0.0, %v837
    %v839 = vpop.f32.mrf.mxu0
    %840 = vdwg.mxu0
    %841 = vmatpush.bf16.msra.mxu0 %v794
    %842 = vmatpush.bf16.msra.mxu0 %v792
    %843 = vmatpush.bf16.msra.mxu0 %v790
    %844 = vmatpush.bf16.msra.mxu0 %v788
    %845 = vmatpush.bf16.msra.mxu0 %v786
    %846 = vmatpush.bf16.msra.mxu0 %v784
    %847 = vmatpush.bf16.msra.mxu0 %v782
    %848 = vmatpush.bf16.msra.mxu0 %v780
    %849 = vmatmul.bf16.gmra.mxu0 %v635
    %v850 = vpop.f32.mrf.mxu0
    %v851 = vadd.f32 %v838, %v850
    %v852 = vpop.f32.mrf.mxu0
    %853 = vdwg.mxu0
    %854 = vmatpush.bf16.msra.mxu0 %v779
    %855 = vmatpush.bf16.msra.mxu0 %v777
    %856 = vmatpush.bf16.msra.mxu0 %v775
    %857 = vmatpush.bf16.msra.mxu0 %v773
    %858 = vmatpush.bf16.msra.mxu0 %v771
    %859 = vmatpush.bf16.msra.mxu0 %v769
    %860 = vmatpush.bf16.msra.mxu0 %v767
    %861 = vmatpush.bf16.msra.mxu0 %v765
    %862 = vmatmul.bf16.gmra.mxu0 %v634
    %v863 = vpop.f32.mrf.mxu0
    %v864 = vadd.f32 0.0, %v863
    %v865 = vpop.f32.mrf.mxu0
    %866 = vdwg.mxu0
    %867 = vmatpush.bf16.msra.mxu0 %v795
    %868 = vmatpush.bf16.msra.mxu0 %v793
    %869 = vmatpush.bf16.msra.mxu0 %v791
    %870 = vmatpush.bf16.msra.mxu0 %v789
    %871 = vmatpush.bf16.msra.mxu0 %v787
    %872 = vmatpush.bf16.msra.mxu0 %v785
    %873 = vmatpush.bf16.msra.mxu0 %v783
    %874 = vmatpush.bf16.msra.mxu0 %v781
    %875 = vmatmul.bf16.gmra.mxu0 %v635
    %v876 = vpop.f32.mrf.mxu0
    %v877 = vadd.f32 %v864, %v876
    %v878 = vpop.f32.mrf.mxu0
    %879 = vdwg.mxu0
    %v880 = vadd.f32 %v610, %v851
    %v881 = vadd.f32 %v624, %v877
    %v882 = vtanh.pop %v880
    %v883 = vtanh.pop %v881
    %884 = vst [vmem:[%s9] sm:$0x3] %v882
    %885 = vst [vmem:[%s9 + $0x8] sm:$0x3] %v883
    %v886 = vpack.c.bf16 %v882, %v882
    %v887 = vpack.c.bf16 %v883, %v883
    %v888 = vld [vmem:[#allocation7] sm:$0xff]
    %v889 = vld [vmem:[#allocation7 + $0x8] sm:$0xff]
    %v890 = vld [vmem:[#allocation7 + $0x10] sm:$0xff]
    %v891 = vld [vmem:[#allocation7 + $0x18] sm:$0xff]
    %v892 = vld [vmem:[#allocation7 + $0x20] sm:$0xff]
    %v893 = vld [vmem:[#allocation7 + $0x28] sm:$0xff]
    %v894 = vld [vmem:[#allocation7 + $0x30] sm:$0xff]
    %v895 = vld [vmem:[#allocation7 + $0x38] sm:$0xff]
    %v896 = vld [vmem:[#allocation7 + $0x40] sm:$0xff]
    %v897 = vld [vmem:[#allocation7 + $0x48] sm:$0xff]
    %v898 = vld [vmem:[#allocation7 + $0x50] sm:$0xff]
    %v899 = vld [vmem:[#allocation7 + $0x58] sm:$0xff]
    %v900 = vld [vmem:[#allocation7 + $0x60] sm:$0xff]
    %v901 = vld [vmem:[#allocation7 + $0x68] sm:$0xff]
    %v902 = vld [vmem:[#allocation7 + $0x70] sm:$0xff]
    %v903 = vld [vmem:[#allocation7 + $0x78] sm:$0xff]
    %v904 = vld [vmem:[#allocation7 + $0x80] sm:$0xff]
    %v905 = vld [vmem:[#allocation7 + $0x88] sm:$0xff]
    %v906 = vld [vmem:[#allocation7 + $0x90] sm:$0xff]
    %v907 = vld [vmem:[#allocation7 + $0x98] sm:$0xff]
    %v908 = vld [vmem:[#allocation7 + $0xa0] sm:$0xff]
    %v909 = vld [vmem:[#allocation7 + $0xa8] sm:$0xff]
    %v910 = vld [vmem:[#allocation7 + $0xb0] sm:$0xff]
    %v911 = vld [vmem:[#allocation7 + $0xb8] sm:$0xff]
    %v912 = vld [vmem:[#allocation7 + $0xc0] sm:$0xff]
    %v913 = vld [vmem:[#allocation7 + $0xc8] sm:$0xff]
    %v914 = vld [vmem:[#allocation7 + $0xd0] sm:$0xff]
    %v915 = vld [vmem:[#allocation7 + $0xd8] sm:$0xff]
    %v916 = vld [vmem:[#allocation7 + $0xe0] sm:$0xff]
    %v917 = vld [vmem:[#allocation7 + $0xe8] sm:$0xff]
    %v918 = vld [vmem:[#allocation7 + $0xf0] sm:$0xff]
    %v919 = vld [vmem:[#allocation7 + $0xf8] sm:$0xff]
    %v952 = vunpack.c.l.b16 %v888
    %v953 = vunpack.c.h.b16 %v888
    %v954 = vunpack.c.l.b16 %v889
    %v955 = vunpack.c.h.b16 %v889
    %v956 = vunpack.c.l.b16 %v890
    %v957 = vunpack.c.h.b16 %v890
    %v958 = vunpack.c.l.b16 %v891
    %v959 = vunpack.c.h.b16 %v891
    %v960 = vunpack.c.l.b16 %v892
    %v961 = vunpack.c.h.b16 %v892
    %v962 = vunpack.c.l.b16 %v893
    %v963 = vunpack.c.h.b16 %v893
    %v964 = vunpack.c.l.b16 %v894
    %v965 = vunpack.c.h.b16 %v894
    %v966 = vunpack.c.l.b16 %v895
    %v967 = vunpack.c.h.b16 %v895
    %v968 = vunpack.c.l.b16 %v896
    %v969 = vunpack.c.h.b16 %v896
    %v970 = vunpack.c.l.b16 %v897
    %v971 = vunpack.c.h.b16 %v897
    %v972 = vunpack.c.l.b16 %v898
    %v973 = vunpack.c.h.b16 %v898
    %v974 = vunpack.c.l.b16 %v899
    %v975 = vunpack.c.h.b16 %v899
    %v976 = vunpack.c.l.b16 %v900
    %v977 = vunpack.c.h.b16 %v900
    %v978 = vunpack.c.l.b16 %v901
    %v979 = vunpack.c.h.b16 %v901
    %v980 = vunpack.c.l.b16 %v902
    %v981 = vunpack.c.h.b16 %v902
    %v982 = vunpack.c.l.b16 %v903
    %v983 = vunpack.c.h.b16 %v903
    %v984 = vunpack.c.l.b16 %v904
    %v985 = vunpack.c.h.b16 %v904
    %v986 = vunpack.c.l.b16 %v905
    %v987 = vunpack.c.h.b16 %v905
    %v988 = vunpack.c.l.b16 %v906
    %v989 = vunpack.c.h.b16 %v906
    %v990 = vunpack.c.l.b16 %v907
    %v991 = vunpack.c.h.b16 %v907
    %v992 = vunpack.c.l.b16 %v908
    %v993 = vunpack.c.h.b16 %v908
    %v994 = vunpack.c.l.b16 %v909
    %v995 = vunpack.c.h.b16 %v909
    %v996 = vunpack.c.l.b16 %v910
    %v997 = vunpack.c.h.b16 %v910
    %v998 = vunpack.c.l.b16 %v911
    %v999 = vunpack.c.h.b16 %v911
    %v1000 = vunpack.c.l.b16 %v912
    %v1001 = vunpack.c.h.b16 %v912
    %v1002 = vunpack.c.l.b16 %v913
    %v1003 = vunpack.c.h.b16 %v913
    %v1004 = vunpack.c.l.b16 %v914
    %v1005 = vunpack.c.h.b16 %v914
    %v1006 = vunpack.c.l.b16 %v915
    %v1007 = vunpack.c.h.b16 %v915
    %v1008 = vunpack.c.l.b16 %v916
    %v1009 = vunpack.c.h.b16 %v916
    %v1010 = vunpack.c.l.b16 %v917
    %v1011 = vunpack.c.h.b16 %v917
    %v1012 = vunpack.c.l.b16 %v918
    %v1013 = vunpack.c.h.b16 %v918
    %v1014 = vunpack.c.l.b16 %v919
    %v1015 = vunpack.c.h.b16 %v919
    %v1016 = vpack.c.b16 %v954, %v952
    %v1017 = vpack.c.b16 %v955, %v953
    %v1018 = vpack.c.b16 %v958, %v956
    %v1019 = vpack.c.b16 %v959, %v957
    %v1020 = vpack.c.b16 %v962, %v960
    %v1021 = vpack.c.b16 %v963, %v961
    %v1022 = vpack.c.b16 %v966, %v964
    %v1023 = vpack.c.b16 %v967, %v965
    %v1024 = vpack.c.b16 %v970, %v968
    %v1025 = vpack.c.b16 %v971, %v969
    %v1026 = vpack.c.b16 %v974, %v972
    %v1027 = vpack.c.b16 %v975, %v973
    %v1028 = vpack.c.b16 %v978, %v976
    %v1029 = vpack.c.b16 %v979, %v977
    %v1030 = vpack.c.b16 %v982, %v980
    %v1031 = vpack.c.b16 %v983, %v981
    %v1032 = vpack.c.b16 %v986, %v984
    %v1033 = vpack.c.b16 %v987, %v985
    %v1034 = vpack.c.b16 %v990, %v988
    %v1035 = vpack.c.b16 %v991, %v989
    %v1036 = vpack.c.b16 %v994, %v992
    %v1037 = vpack.c.b16 %v995, %v993
    %v1038 = vpack.c.b16 %v998, %v996
    %v1039 = vpack.c.b16 %v999, %v997
    %v1040 = vpack.c.b16 %v1002, %v1000
    %v1041 = vpack.c.b16 %v1003, %v1001
    %v1042 = vpack.c.b16 %v1006, %v1004
    %v1043 = vpack.c.b16 %v1007, %v1005
    %v1044 = vpack.c.b16 %v1010, %v1008
    %v1045 = vpack.c.b16 %v1011, %v1009
    %v1046 = vpack.c.b16 %v1014, %v1012
    %v1047 = vpack.c.b16 %v1015, %v1013
    %1080 = vmatpush.bf16.msra.mxu0 %v1030
    %1081 = vmatpush.bf16.msra.mxu0 %v1028
    %1082 = vmatpush.bf16.msra.mxu0 %v1026
    %1083 = vmatpush.bf16.msra.mxu0 %v1024
    %1084 = vmatpush.bf16.msra.mxu0 %v1022
    %1085 = vmatpush.bf16.msra.mxu0 %v1020
    %1086 = vmatpush.bf16.msra.mxu0 %v1018
    %1087 = vmatpush.bf16.msra.mxu0 %v1016
    %1088 = vmatmul.bf16.gmra.mxu0 %v886
    %v1089 = vpop.f32.mrf.mxu0
    %v1090 = vadd.f32 0.0, %v1089
    %v1091 = vpop.f32.mrf.mxu0
    %1092 = vdwg.mxu0
    %1093 = vmatpush.bf16.msra.mxu0 %v1046
    %1094 = vmatpush.bf16.msra.mxu0 %v1044
    %1095 = vmatpush.bf16.msra.mxu0 %v1042
    %1096 = vmatpush.bf16.msra.mxu0 %v1040
    %1097 = vmatpush.bf16.msra.mxu0 %v1038
    %1098 = vmatpush.bf16.msra.mxu0 %v1036
    %1099 = vmatpush.bf16.msra.mxu0 %v1034
    %1100 = vmatpush.bf16.msra.mxu0 %v1032
    %1101 = vmatmul.bf16.gmra.mxu0 %v887
    %v1102 = vpop.f32.mrf.mxu0
    %v1103 = vadd.f32 %v1090, %v1102
    %v1104 = vpop.f32.mrf.mxu0
    %1105 = vdwg.mxu0
    %1106 = vmatpush.bf16.msra.mxu0 %v1031
    %1107 = vmatpush.bf16.msra.mxu0 %v1029
    %1108 = vmatpush.bf16.msra.mxu0 %v1027
    %1109 = vmatpush.bf16.msra.mxu0 %v1025
    %1110 = vmatpush.bf16.msra.mxu0 %v1023
    %1111 = vmatpush.bf16.msra.mxu0 %v1021
    %1112 = vmatpush.bf16.msra.mxu0 %v1019
    %1113 = vmatpush.bf16.msra.mxu0 %v1017
    %1114 = vmatmul.bf16.gmra.mxu0 %v886
    %v1115 = vpop.f32.mrf.mxu0
    %v1116 = vadd.f32 0.0, %v1115
    %v1117 = vpop.f32.mrf.mxu0
    %1118 = vdwg.mxu0
    %1119 = vmatpush.bf16.msra.mxu0 %v1047
    %1120 = vmatpush.bf16.msra.mxu0 %v1045
    %1121 = vmatpush.bf16.msra.mxu0 %v1043
    %1122 = vmatpush.bf16.msra.mxu0 %v1041
    %1123 = vmatpush.bf16.msra.mxu0 %v1039
    %1124 = vmatpush.bf16.msra.mxu0 %v1037
    %1125 = vmatpush.bf16.msra.mxu0 %v1035
    %1126 = vmatpush.bf16.msra.mxu0 %v1033
    %1127 = vmatmul.bf16.gmra.mxu0 %v887
    %v1128 = vpop.f32.mrf.mxu0
    %v1129 = vadd.f32 %v1116, %v1128
    %v1130 = vpop.f32.mrf.mxu0
    %1131 = vdwg.mxu0
    %v1134 = vrot.slane %v1103, 6
    %v1135 = vrot.slane %v1129, 6
    %v1138 = vadd.f32 %v610, %v1134
    %v1139 = vadd.f32 %v624, %v1135
    %v1140 = vtanh.pop %v1138
    %v1141 = vtanh.pop %v1139
    %1142 = vst [vmem:[%s9] sm:$0xc] %v1140
    %1143 = vst [vmem:[%s9 + $0x8] sm:$0xc] %v1141
    %v1144 = vpack.c.bf16 %v1140, %v1140
    %v1145 = vpack.c.bf16 %v1141, %v1141
    %v1146 = vld [vmem:[#allocation7] sm:$0xff]
    %v1147 = vld [vmem:[#allocation7 + $0x8] sm:$0xff]
    %v1148 = vld [vmem:[#allocation7 + $0x10] sm:$0xff]
    %v1149 = vld [vmem:[#allocation7 + $0x18] sm:$0xff]
    %v1150 = vld [vmem:[#allocation7 + $0x20] sm:$0xff]
    %v1151 = vld [vmem:[#allocation7 + $0x28] sm:$0xff]
    %v1152 = vld [vmem:[#allocation7 + $0x30] sm:$0xff]
    %v1153 = vld [vmem:[#allocation7 + $0x38] sm:$0xff]
    %v1154 = vld [vmem:[#allocation7 + $0x40] sm:$0xff]
    %v1155 = vld [vmem:[#allocation7 + $0x48] sm:$0xff]
    %v1156 = vld [vmem:[#allocation7 + $0x50] sm:$0xff]
    %v1157 = vld [vmem:[#allocation7 + $0x58] sm:$0xff]
    %v1158 = vld [vmem:[#allocation7 + $0x60] sm:$0xff]
    %v1159 = vld [vmem:[#allocation7 + $0x68] sm:$0xff]
    %v1160 = vld [vmem:[#allocation7 + $0x70] sm:$0xff]
    %v1161 = vld [vmem:[#allocation7 + $0x78] sm:$0xff]
    %v1162 = vld [vmem:[#allocation7 + $0x80] sm:$0xff]
    %v1163 = vld [vmem:[#allocation7 + $0x88] sm:$0xff]
    %v1164 = vld [vmem:[#allocation7 + $0x90] sm:$0xff]
    %v1165 = vld [vmem:[#allocation7 + $0x98] sm:$0xff]
    %v1166 = vld [vmem:[#allocation7 + $0xa0] sm:$0xff]
    %v1167 = vld [vmem:[#allocation7 + $0xa8] sm:$0xff]
    %v1168 = vld [vmem:[#allocation7 + $0xb0] sm:$0xff]
    %v1169 = vld [vmem:[#allocation7 + $0xb8] sm:$0xff]
    %v1170 = vld [vmem:[#allocation7 + $0xc0] sm:$0xff]
    %v1171 = vld [vmem:[#allocation7 + $0xc8] sm:$0xff]
    %v1172 = vld [vmem:[#allocation7 + $0xd0] sm:$0xff]
    %v1173 = vld [vmem:[#allocation7 + $0xd8] sm:$0xff]
    %v1174 = vld [vmem:[#allocation7 + $0xe0] sm:$0xff]
    %v1175 = vld [vmem:[#allocation7 + $0xe8] sm:$0xff]
    %v1176 = vld [vmem:[#allocation7 + $0xf0] sm:$0xff]
    %v1177 = vld [vmem:[#allocation7 + $0xf8] sm:$0xff]
    %v1180 = vrot.slane %v1144, 1
    %v1181 = vrot.slane %v1145, 1
    %v1216 = vunpack.c.l.b16 %v1146
    %v1217 = vunpack.c.h.b16 %v1146
    %v1218 = vunpack.c.l.b16 %v1147
    %v1219 = vunpack.c.h.b16 %v1147
    %v1220 = vunpack.c.l.b16 %v1148
    %v1221 = vunpack.c.h.b16 %v1148
    %v1222 = vunpack.c.l.b16 %v1149
    %v1223 = vunpack.c.h.b16 %v1149
    %v1224 = vunpack.c.l.b16 %v1150
    %v1225 = vunpack.c.h.b16 %v1150
    %v1226 = vunpack.c.l.b16 %v1151
    %v1227 = vunpack.c.h.b16 %v1151
    %v1228 = vunpack.c.l.b16 %v1152
    %v1229 = vunpack.c.h.b16 %v1152
    %v1230 = vunpack.c.l.b16 %v1153
    %v1231 = vunpack.c.h.b16 %v1153
    %v1232 = vunpack.c.l.b16 %v1154
    %v1233 = vunpack.c.h.b16 %v1154
    %v1234 = vunpack.c.l.b16 %v1155
    %v1235 = vunpack.c.h.b16 %v1155
    %v1236 = vunpack.c.l.b16 %v1156
    %v1237 = vunpack.c.h.b16 %v1156
    %v1238 = vunpack.c.l.b16 %v1157
    %v1239 = vunpack.c.h.b16 %v1157
    %v1240 = vunpack.c.l.b16 %v1158
    %v1241 = vunpack.c.h.b16 %v1158
    %v1242 = vunpack.c.l.b16 %v1159
    %v1243 = vunpack.c.h.b16 %v1159
    %v1244 = vunpack.c.l.b16 %v1160
    %v1245 = vunpack.c.h.b16 %v1160
    %v1246 = vunpack.c.l.b16 %v1161
    %v1247 = vunpack.c.h.b16 %v1161
    %v1248 = vunpack.c.l.b16 %v1162
    %v1249 = vunpack.c.h.b16 %v1162
    %v1250 = vunpack.c.l.b16 %v1163
    %v1251 = vunpack.c.h.b16 %v1163
    %v1252 = vunpack.c.l.b16 %v1164
    %v1253 = vunpack.c.h.b16 %v1164
    %v1254 = vunpack.c.l.b16 %v1165
    %v1255 = vunpack.c.h.b16 %v1165
    %v1256 = vunpack.c.l.b16 %v1166
    %v1257 = vunpack.c.h.b16 %v1166
    %v1258 = vunpack.c.l.b16 %v1167
    %v1259 = vunpack.c.h.b16 %v1167
    %v1260 = vunpack.c.l.b16 %v1168
    %v1261 = vunpack.c.h.b16 %v1168
    %v1262 = vunpack.c.l.b16 %v1169
    %v1263 = vunpack.c.h.b16 %v1169
    %v1264 = vunpack.c.l.b16 %v1170
    %v1265 = vunpack.c.h.b16 %v1170
    %v1266 = vunpack.c.l.b16 %v1171
    %v1267 = vunpack.c.h.b16 %v1171
    %v1268 = vunpack.c.l.b16 %v1172
    %v1269 = vunpack.c.h.b16 %v1172
    %v1270 = vunpack.c.l.b16 %v1173
    %v1271 = vunpack.c.h.b16 %v1173
    %v1272 = vunpack.c.l.b16 %v1174
    %v1273 = vunpack.c.h.b16 %v1174
    %v1274 = vunpack.c.l.b16 %v1175
    %v1275 = vunpack.c.h.b16 %v1175
    %v1276 = vunpack.c.l.b16 %v1176
    %v1277 = vunpack.c.h.b16 %v1176
    %v1278 = vunpack.c.l.b16 %v1177
    %v1279 = vunpack.c.h.b16 %v1177
    %v1280 = vpack.c.b16 %v1218, %v1216
    %v1281 = vpack.c.b16 %v1219, %v1217
    %v1282 = vpack.c.b16 %v1222, %v1220
    %v1283 = vpack.c.b16 %v1223, %v1221
    %v1284 = vpack.c.b16 %v1226, %v1224
    %v1285 = vpack.c.b16 %v1227, %v1225
    %v1286 = vpack.c.b16 %v1230, %v1228
    %v1287 = vpack.c.b16 %v1231, %v1229
    %v1288 = vpack.c.b16 %v1234, %v1232
    %v1289 = vpack.c.b16 %v1235, %v1233
    %v1290 = vpack.c.b16 %v1238, %v1236
    %v1291 = vpack.c.b16 %v1239, %v1237
    %v1292 = vpack.c.b16 %v1242, %v1240
    %v1293 = vpack.c.b16 %v1243, %v1241
    %v1294 = vpack.c.b16 %v1246, %v1244
    %v1295 = vpack.c.b16 %v1247, %v1245
    %v1296 = vpack.c.b16 %v1250, %v1248
    %v1297 = vpack.c.b16 %v1251, %v1249
    %v1298 = vpack.c.b16 %v1254, %v1252
    %v1299 = vpack.c.b16 %v1255, %v1253
    %v1300 = vpack.c.b16 %v1258, %v1256
    %v1301 = vpack.c.b16 %v1259, %v1257
    %v1302 = vpack.c.b16 %v1262, %v1260
    %v1303 = vpack.c.b16 %v1263, %v1261
    %v1304 = vpack.c.b16 %v1266, %v1264
    %v1305 = vpack.c.b16 %v1267, %v1265
    %v1306 = vpack.c.b16 %v1270, %v1268
    %v1307 = vpack.c.b16 %v1271, %v1269
    %v1308 = vpack.c.b16 %v1274, %v1272
    %v1309 = vpack.c.b16 %v1275, %v1273
    %v1310 = vpack.c.b16 %v1278, %v1276
    %v1311 = vpack.c.b16 %v1279, %v1277
    %1344 = vmatpush.bf16.msra.mxu0 %v1294
    %1345 = vmatpush.bf16.msra.mxu0 %v1292
    %1346 = vmatpush.bf16.msra.mxu0 %v1290
    %1347 = vmatpush.bf16.msra.mxu0 %v1288
    %1348 = vmatpush.bf16.msra.mxu0 %v1286
    %1349 = vmatpush.bf16.msra.mxu0 %v1284
    %1350 = vmatpush.bf16.msra.mxu0 %v1282
    %1351 = vmatpush.bf16.msra.mxu0 %v1280
    %1352 = vmatmul.bf16.gmra.mxu0 %v1180
    %v1353 = vpop.f32.mrf.mxu0
    %v1354 = vadd.f32 0.0, %v1353
    %v1355 = vpop.f32.mrf.mxu0
    %1356 = vdwg.mxu0
    %1357 = vmatpush.bf16.msra.mxu0 %v1310
    %1358 = vmatpush.bf16.msra.mxu0 %v1308
    %1359 = vmatpush.bf16.msra.mxu0 %v1306
    %1360 = vmatpush.bf16.msra.mxu0 %v1304
    %1361 = vmatpush.bf16.msra.mxu0 %v1302
    %1362 = vmatpush.bf16.msra.mxu0 %v1300
    %1363 = vmatpush.bf16.msra.mxu0 %v1298
    %1364 = vmatpush.bf16.msra.mxu0 %v1296
    %1365 = vmatmul.bf16.gmra.mxu0 %v1181
    %v1366 = vpop.f32.mrf.mxu0
    %v1367 = vadd.f32 %v1354, %v1366
    %v1368 = vpop.f32.mrf.mxu0
    %1369 = vdwg.mxu0
    %1370 = vmatpush.bf16.msra.mxu0 %v1295
    %1371 = vmatpush.bf16.msra.mxu0 %v1293
    %1372 = vmatpush.bf16.msra.mxu0 %v1291
    %1373 = vmatpush.bf16.msra.mxu0 %v1289
    %1374 = vmatpush.bf16.msra.mxu0 %v1287
    %1375 = vmatpush.bf16.msra.mxu0 %v1285
    %1376 = vmatpush.bf16.msra.mxu0 %v1283
    %1377 = vmatpush.bf16.msra.mxu0 %v1281
    %1378 = vmatmul.bf16.gmra.mxu0 %v1180
    %v1379 = vpop.f32.mrf.mxu0
    %v1380 = vadd.f32 0.0, %v1379
    %v1381 = vpop.f32.mrf.mxu0
    %1382 = vdwg.mxu0
    %1383 = vmatpush.bf16.msra.mxu0 %v1311
    %1384 = vmatpush.bf16.msra.mxu0 %v1309
    %1385 = vmatpush.bf16.msra.mxu0 %v1307
    %1386 = vmatpush.bf16.msra.mxu0 %v1305
    %1387 = vmatpush.bf16.msra.mxu0 %v1303
    %1388 = vmatpush.bf16.msra.mxu0 %v1301
    %1389 = vmatpush.bf16.msra.mxu0 %v1299
    %1390 = vmatpush.bf16.msra.mxu0 %v1297
    %1391 = vmatmul.bf16.gmra.mxu0 %v1181
    %v1392 = vpop.f32.mrf.mxu0
    %v1393 = vadd.f32 %v1380, %v1392
    %v1394 = vpop.f32.mrf.mxu0
    %1395 = vdwg.mxu0
    %v1398 = vrot.slane %v1367, 4
    %v1399 = vrot.slane %v1393, 4
    %v1402 = vadd.f32 %v610, %v1398
    %v1403 = vadd.f32 %v624, %v1399
    %v1404 = vtanh.pop %v1402
    %v1405 = vtanh.pop %v1403
    %1406 = vst [vmem:[%s9] sm:$0x30] %v1404
    %1407 = vst [vmem:[%s9 + $0x8] sm:$0x30] %v1405
    %v1408 = vpack.c.bf16 %v1404, %v1404
    %v1409 = vpack.c.bf16 %v1405, %v1405
    %v1410 = vld [vmem:[#allocation7] sm:$0xff]
    %v1411 = vld [vmem:[#allocation7 + $0x8] sm:$0xff]
    %v1412 = vld [vmem:[#allocation7 + $0x10] sm:$0xff]
    %v1413 = vld [vmem:[#allocation7 + $0x18] sm:$0xff]
    %v1414 = vld [vmem:[#allocation7 + $0x20] sm:$0xff]
    %v1415 = vld [vmem:[#allocation7 + $0x28] sm:$0xff]
    %v1416 = vld [vmem:[#allocation7 + $0x30] sm:$0xff]
    %v1417 = vld [vmem:[#allocation7 + $0x38] sm:$0xff]
    %v1418 = vld [vmem:[#allocation7 + $0x40] sm:$0xff]
    %v1419 = vld [vmem:[#allocation7 + $0x48] sm:$0xff]
    %v1420 = vld [vmem:[#allocation7 + $0x50] sm:$0xff]
    %v1421 = vld [vmem:[#allocation7 + $0x58] sm:$0xff]
    %v1422 = vld [vmem:[#allocation7 + $0x60] sm:$0xff]
    %v1423 = vld [vmem:[#allocation7 + $0x68] sm:$0xff]
    %v1424 = vld [vmem:[#allocation7 + $0x70] sm:$0xff]
    %v1425 = vld [vmem:[#allocation7 + $0x78] sm:$0xff]
    %v1426 = vld [vmem:[#allocation7 + $0x80] sm:$0xff]
    %v1427 = vld [vmem:[#allocation7 + $0x88] sm:$0xff]
    %v1428 = vld [vmem:[#allocation7 + $0x90] sm:$0xff]
    %v1429 = vld [vmem:[#allocation7 + $0x98] sm:$0xff]
    %v1430 = vld [vmem:[#allocation7 + $0xa0] sm:$0xff]
    %v1431 = vld [vmem:[#allocation7 + $0xa8] sm:$0xff]
    %v1432 = vld [vmem:[#allocation7 + $0xb0] sm:$0xff]
    %v1433 = vld [vmem:[#allocation7 + $0xb8] sm:$0xff]
    %v1434 = vld [vmem:[#allocation7 + $0xc0] sm:$0xff]
    %v1435 = vld [vmem:[#allocation7 + $0xc8] sm:$0xff]
    %v1436 = vld [vmem:[#allocation7 + $0xd0] sm:$0xff]
    %v1437 = vld [vmem:[#allocation7 + $0xd8] sm:$0xff]
    %v1438 = vld [vmem:[#allocation7 + $0xe0] sm:$0xff]
    %v1439 = vld [vmem:[#allocation7 + $0xe8] sm:$0xff]
    %v1440 = vld [vmem:[#allocation7 + $0xf0] sm:$0xff]
    %v1441 = vld [vmem:[#allocation7 + $0xf8] sm:$0xff]
    %v1444 = vrot.slane %v1408, 2
    %v1445 = vrot.slane %v1409, 2
    %v1480 = vunpack.c.l.b16 %v1410
    %v1481 = vunpack.c.h.b16 %v1410
    %v1482 = vunpack.c.l.b16 %v1411
    %v1483 = vunpack.c.h.b16 %v1411
    %v1484 = vunpack.c.l.b16 %v1412
    %v1485 = vunpack.c.h.b16 %v1412
    %v1486 = vunpack.c.l.b16 %v1413
    %v1487 = vunpack.c.h.b16 %v1413
    %v1488 = vunpack.c.l.b16 %v1414
    %v1489 = vunpack.c.h.b16 %v1414
    %v1490 = vunpack.c.l.b16 %v1415
    %v1491 = vunpack.c.h.b16 %v1415
    %v1492 = vunpack.c.l.b16 %v1416
    %v1493 = vunpack.c.h.b16 %v1416
    %v1494 = vunpack.c.l.b16 %v1417
    %v1495 = vunpack.c.h.b16 %v1417
    %v1496 = vunpack.c.l.b16 %v1418
    %v1497 = vunpack.c.h.b16 %v1418
    %v1498 = vunpack.c.l.b16 %v1419
    %v1499 = vunpack.c.h.b16 %v1419
    %v1500 = vunpack.c.l.b16 %v1420
    %v1501 = vunpack.c.h.b16 %v1420
    %v1502 = vunpack.c.l.b16 %v1421
    %v1503 = vunpack.c.h.b16 %v1421
    %v1504 = vunpack.c.l.b16 %v1422
    %v1505 = vunpack.c.h.b16 %v1422
    %v1506 = vunpack.c.l.b16 %v1423
    %v1507 = vunpack.c.h.b16 %v1423
    %v1508 = vunpack.c.l.b16 %v1424
    %v1509 = vunpack.c.h.b16 %v1424
    %v1510 = vunpack.c.l.b16 %v1425
    %v1511 = vunpack.c.h.b16 %v1425
    %v1512 = vunpack.c.l.b16 %v1426
    %v1513 = vunpack.c.h.b16 %v1426
    %v1514 = vunpack.c.l.b16 %v1427
    %v1515 = vunpack.c.h.b16 %v1427
    %v1516 = vunpack.c.l.b16 %v1428
    %v1517 = vunpack.c.h.b16 %v1428
    %v1518 = vunpack.c.l.b16 %v1429
    %v1519 = vunpack.c.h.b16 %v1429
    %v1520 = vunpack.c.l.b16 %v1430
    %v1521 = vunpack.c.h.b16 %v1430
    %v1522 = vunpack.c.l.b16 %v1431
    %v1523 = vunpack.c.h.b16 %v1431
    %v1524 = vunpack.c.l.b16 %v1432
    %v1525 = vunpack.c.h.b16 %v1432
    %v1526 = vunpack.c.l.b16 %v1433
    %v1527 = vunpack.c.h.b16 %v1433
    %v1528 = vunpack.c.l.b16 %v1434
    %v1529 = vunpack.c.h.b16 %v1434
    %v1530 = vunpack.c.l.b16 %v1435
    %v1531 = vunpack.c.h.b16 %v1435
    %v1532 = vunpack.c.l.b16 %v1436
    %v1533 = vunpack.c.h.b16 %v1436
    %v1534 = vunpack.c.l.b16 %v1437
    %v1535 = vunpack.c.h.b16 %v1437
    %v1536 = vunpack.c.l.b16 %v1438
    %v1537 = vunpack.c.h.b16 %v1438
    %v1538 = vunpack.c.l.b16 %v1439
    %v1539 = vunpack.c.h.b16 %v1439
    %v1540 = vunpack.c.l.b16 %v1440
    %v1541 = vunpack.c.h.b16 %v1440
    %v1542 = vunpack.c.l.b16 %v1441
    %v1543 = vunpack.c.h.b16 %v1441
    %v1544 = vpack.c.b16 %v1482, %v1480
    %v1545 = vpack.c.b16 %v1483, %v1481
    %v1546 = vpack.c.b16 %v1486, %v1484
    %v1547 = vpack.c.b16 %v1487, %v1485
    %v1548 = vpack.c.b16 %v1490, %v1488
    %v1549 = vpack.c.b16 %v1491, %v1489
    %v1550 = vpack.c.b16 %v1494, %v1492
    %v1551 = vpack.c.b16 %v1495, %v1493
    %v1552 = vpack.c.b16 %v1498, %v1496
    %v1553 = vpack.c.b16 %v1499, %v1497
    %v1554 = vpack.c.b16 %v1502, %v1500
    %v1555 = vpack.c.b16 %v1503, %v1501
    %v1556 = vpack.c.b16 %v1506, %v1504
    %v1557 = vpack.c.b16 %v1507, %v1505
    %v1558 = vpack.c.b16 %v1510, %v1508
    %v1559 = vpack.c.b16 %v1511, %v1509
    %v1560 = vpack.c.b16 %v1514, %v1512
    %v1561 = vpack.c.b16 %v1515, %v1513
    %v1562 = vpack.c.b16 %v1518, %v1516
    %v1563 = vpack.c.b16 %v1519, %v1517
    %v1564 = vpack.c.b16 %v1522, %v1520
    %v1565 = vpack.c.b16 %v1523, %v1521
    %v1566 = vpack.c.b16 %v1526, %v1524
    %v1567 = vpack.c.b16 %v1527, %v1525
    %v1568 = vpack.c.b16 %v1530, %v1528
    %v1569 = vpack.c.b16 %v1531, %v1529
    %v1570 = vpack.c.b16 %v1534, %v1532
    %v1571 = vpack.c.b16 %v1535, %v1533
    %v1572 = vpack.c.b16 %v1538, %v1536
    %v1573 = vpack.c.b16 %v1539, %v1537
    %v1574 = vpack.c.b16 %v1542, %v1540
    %v1575 = vpack.c.b16 %v1543, %v1541
    %1608 = vmatpush.bf16.msra.mxu0 %v1558
    %1609 = vmatpush.bf16.msra.mxu0 %v1556
    %1610 = vmatpush.bf16.msra.mxu0 %v1554
    %1611 = vmatpush.bf16.msra.mxu0 %v1552
    %1612 = vmatpush.bf16.msra.mxu0 %v1550
    %1613 = vmatpush.bf16.msra.mxu0 %v1548
    %1614 = vmatpush.bf16.msra.mxu0 %v1546
    %1615 = vmatpush.bf16.msra.mxu0 %v1544
    %1616 = vmatmul.bf16.gmra.mxu0 %v1444
    %v1617 = vpop.f32.mrf.mxu0
    %v1618 = vadd.f32 0.0, %v1617
    %v1619 = vpop.f32.mrf.mxu0
    %1620 = vdwg.mxu0
    %1621 = vmatpush.bf16.msra.mxu0 %v1574
    %1622 = vmatpush.bf16.msra.mxu0 %v1572
    %1623 = vmatpush.bf16.msra.mxu0 %v1570
    %1624 = vmatpush.bf16.msra.mxu0 %v1568
    %1625 = vmatpush.bf16.msra.mxu0 %v1566
    %1626 = vmatpush.bf16.msra.mxu0 %v1564
    %1627 = vmatpush.bf16.msra.mxu0 %v1562
    %1628 = vmatpush.bf16.msra.mxu0 %v1560
    %1629 = vmatmul.bf16.gmra.mxu0 %v1445
    %v1630 = vpop.f32.mrf.mxu0
    %v1631 = vadd.f32 %v1618, %v1630
    %v1632 = vpop.f32.mrf.mxu0
    %1633 = vdwg.mxu0
    %1634 = vmatpush.bf16.msra.mxu0 %v1559
    %1635 = vmatpush.bf16.msra.mxu0 %v1557
    %1636 = vmatpush.bf16.msra.mxu0 %v1555
    %1637 = vmatpush.bf16.msra.mxu0 %v1553
    %1638 = vmatpush.bf16.msra.mxu0 %v1551
    %1639 = vmatpush.bf16.msra.mxu0 %v1549
    %1640 = vmatpush.bf16.msra.mxu0 %v1547
    %1641 = vmatpush.bf16.msra.mxu0 %v1545
    %1642 = vmatmul.bf16.gmra.mxu0 %v1444
    %v1643 = vpop.f32.mrf.mxu0
    %v1644 = vadd.f32 0.0, %v1643
    %v1645 = vpop.f32.mrf.mxu0
    %1646 = vdwg.mxu0
    %1647 = vmatpush.bf16.msra.mxu0 %v1575
    %1648 = vmatpush.bf16.msra.mxu0 %v1573
    %1649 = vmatpush.bf16.msra.mxu0 %v1571
    %1650 = vmatpush.bf16.msra.mxu0 %v1569
    %1651 = vmatpush.bf16.msra.mxu0 %v1567
    %1652 = vmatpush.bf16.msra.mxu0 %v1565
    %1653 = vmatpush.bf16.msra.mxu0 %v1563
    %1654 = vmatpush.bf16.msra.mxu0 %v1561
    %1655 = vmatmul.bf16.gmra.mxu0 %v1445
    %v1656 = vpop.f32.mrf.mxu0
    %v1657 = vadd.f32 %v1644, %v1656
    %v1658 = vpop.f32.mrf.mxu0
    %1659 = vdwg.mxu0
    %v1662 = vrot.slane %v1631, 2
    %v1663 = vrot.slane %v1657, 2
    %v1666 = vadd.f32 %v610, %v1662
    %v1667 = vadd.f32 %v624, %v1663
    %v1668 = vtanh.pop %v1666
    %v1669 = vtanh.pop %v1667
    %1670 = vst [vmem:[%s9] sm:$0xc0] %v1668
    %1671 = vst [vmem:[%s9 + $0x8] sm:$0xc0] %v1669
    %v1672 = vpack.c.bf16 %v1668, %v1668
    %v1673 = vpack.c.bf16 %v1669, %v1669
    %v1674 = vld [vmem:[#allocation7] sm:$0xff]
    %v1675 = vld [vmem:[#allocation7 + $0x8] sm:$0xff]
    %v1676 = vld [vmem:[#allocation7 + $0x10] sm:$0xff]
    %v1677 = vld [vmem:[#allocation7 + $0x18] sm:$0xff]
    %v1678 = vld [vmem:[#allocation7 + $0x20] sm:$0xff]
    %v1679 = vld [vmem:[#allocation7 + $0x28] sm:$0xff]
    %v1680 = vld [vmem:[#allocation7 + $0x30] sm:$0xff]
    %v1681 = vld [vmem:[#allocation7 + $0x38] sm:$0xff]
    %v1682 = vld [vmem:[#allocation7 + $0x40] sm:$0xff]
    %v1683 = vld [vmem:[#allocation7 + $0x48] sm:$0xff]
    %v1684 = vld [vmem:[#allocation7 + $0x50] sm:$0xff]
    %v1685 = vld [vmem:[#allocation7 + $0x58] sm:$0xff]
    %v1686 = vld [vmem:[#allocation7 + $0x60] sm:$0xff]
    %v1687 = vld [vmem:[#allocation7 + $0x68] sm:$0xff]
    %v1688 = vld [vmem:[#allocation7 + $0x70] sm:$0xff]
    %v1689 = vld [vmem:[#allocation7 + $0x78] sm:$0xff]
    %v1690 = vld [vmem:[#allocation7 + $0x80] sm:$0xff]
    %v1691 = vld [vmem:[#allocation7 + $0x88] sm:$0xff]
    %v1692 = vld [vmem:[#allocation7 + $0x90] sm:$0xff]
    %v1693 = vld [vmem:[#allocation7 + $0x98] sm:$0xff]
    %v1694 = vld [vmem:[#allocation7 + $0xa0] sm:$0xff]
    %v1695 = vld [vmem:[#allocation7 + $0xa8] sm:$0xff]
    %v1696 = vld [vmem:[#allocation7 + $0xb0] sm:$0xff]
    %v1697 = vld [vmem:[#allocation7 + $0xb8] sm:$0xff]
    %v1698 = vld [vmem:[#allocation7 + $0xc0] sm:$0xff]
    %v1699 = vld [vmem:[#allocation7 + $0xc8] sm:$0xff]
    %v1700 = vld [vmem:[#allocation7 + $0xd0] sm:$0xff]
    %v1701 = vld [vmem:[#allocation7 + $0xd8] sm:$0xff]
    %v1702 = vld [vmem:[#allocation7 + $0xe0] sm:$0xff]
    %v1703 = vld [vmem:[#allocation7 + $0xe8] sm:$0xff]
    %v1704 = vld [vmem:[#allocation7 + $0xf0] sm:$0xff]
    %v1705 = vld [vmem:[#allocation7 + $0xf8] sm:$0xff]
    %v1708 = vrot.slane %v1672, 3
    %v1709 = vrot.slane %v1673, 3
    %v1744 = vunpack.c.l.b16 %v1674
    %v1745 = vunpack.c.h.b16 %v1674
    %v1746 = vunpack.c.l.b16 %v1675
    %v1747 = vunpack.c.h.b16 %v1675
    %v1748 = vunpack.c.l.b16 %v1676
    %v1749 = vunpack.c.h.b16 %v1676
    %v1750 = vunpack.c.l.b16 %v1677
    %v1751 = vunpack.c.h.b16 %v1677
    %v1752 = vunpack.c.l.b16 %v1678
    %v1753 = vunpack.c.h.b16 %v1678
    %v1754 = vunpack.c.l.b16 %v1679
    %v1755 = vunpack.c.h.b16 %v1679
    %v1756 = vunpack.c.l.b16 %v1680
    %v1757 = vunpack.c.h.b16 %v1680
    %v1758 = vunpack.c.l.b16 %v1681
    %v1759 = vunpack.c.h.b16 %v1681
    %v1760 = vunpack.c.l.b16 %v1682
    %v1761 = vunpack.c.h.b16 %v1682
    %v1762 = vunpack.c.l.b16 %v1683
    %v1763 = vunpack.c.h.b16 %v1683
    %v1764 = vunpack.c.l.b16 %v1684
    %v1765 = vunpack.c.h.b16 %v1684
    %v1766 = vunpack.c.l.b16 %v1685
    %v1767 = vunpack.c.h.b16 %v1685
    %v1768 = vunpack.c.l.b16 %v1686
    %v1769 = vunpack.c.h.b16 %v1686
    %v1770 = vunpack.c.l.b16 %v1687
    %v1771 = vunpack.c.h.b16 %v1687
    %v1772 = vunpack.c.l.b16 %v1688
    %v1773 = vunpack.c.h.b16 %v1688
    %v1774 = vunpack.c.l.b16 %v1689
    %v1775 = vunpack.c.h.b16 %v1689
    %v1776 = vunpack.c.l.b16 %v1690
    %v1777 = vunpack.c.h.b16 %v1690
    %v1778 = vunpack.c.l.b16 %v1691
    %v1779 = vunpack.c.h.b16 %v1691
    %v1780 = vunpack.c.l.b16 %v1692
    %v1781 = vunpack.c.h.b16 %v1692
    %v1782 = vunpack.c.l.b16 %v1693
    %v1783 = vunpack.c.h.b16 %v1693
    %v1784 = vunpack.c.l.b16 %v1694
    %v1785 = vunpack.c.h.b16 %v1694
    %v1786 = vunpack.c.l.b16 %v1695
    %v1787 = vunpack.c.h.b16 %v1695
    %v1788 = vunpack.c.l.b16 %v1696
    %v1789 = vunpack.c.h.b16 %v1696
    %v1790 = vunpack.c.l.b16 %v1697
    %v1791 = vunpack.c.h.b16 %v1697
    %v1792 = vunpack.c.l.b16 %v1698
    %v1793 = vunpack.c.h.b16 %v1698
    %v1794 = vunpack.c.l.b16 %v1699
    %v1795 = vunpack.c.h.b16 %v1699
    %v1796 = vunpack.c.l.b16 %v1700
    %v1797 = vunpack.c.h.b16 %v1700
    %v1798 = vunpack.c.l.b16 %v1701
    %v1799 = vunpack.c.h.b16 %v1701
    %v1800 = vunpack.c.l.b16 %v1702
    %v1801 = vunpack.c.h.b16 %v1702
    %v1802 = vunpack.c.l.b16 %v1703
    %v1803 = vunpack.c.h.b16 %v1703
    %v1804 = vunpack.c.l.b16 %v1704
    %v1805 = vunpack.c.h.b16 %v1704
    %v1806 = vunpack.c.l.b16 %v1705
    %v1807 = vunpack.c.h.b16 %v1705
    %v1808 = vpack.c.b16 %v1746, %v1744
    %v1809 = vpack.c.b16 %v1747, %v1745
    %v1810 = vpack.c.b16 %v1750, %v1748
    %v1811 = vpack.c.b16 %v1751, %v1749
    %v1812 = vpack.c.b16 %v1754, %v1752
    %v1813 = vpack.c.b16 %v1755, %v1753
    %v1814 = vpack.c.b16 %v1758, %v1756
    %v1815 = vpack.c.b16 %v1759, %v1757
    %v1816 = vpack.c.b16 %v1762, %v1760
    %v1817 = vpack.c.b16 %v1763, %v1761
    %v1818 = vpack.c.b16 %v1766, %v1764
    %v1819 = vpack.c.b16 %v1767, %v1765
    %v1820 = vpack.c.b16 %v1770, %v1768
    %v1821 = vpack.c.b16 %v1771, %v1769
    %v1822 = vpack.c.b16 %v1774, %v1772
    %v1823 = vpack.c.b16 %v1775, %v1773
    %v1824 = vpack.c.b16 %v1778, %v1776
    %v1825 = vpack.c.b16 %v1779, %v1777
    %v1826 = vpack.c.b16 %v1782, %v1780
    %v1827 = vpack.c.b16 %v1783, %v1781
    %v1828 = vpack.c.b16 %v1786, %v1784
    %v1829 = vpack.c.b16 %v1787, %v1785
    %v1830 = vpack.c.b16 %v1790, %v1788
    %v1831 = vpack.c.b16 %v1791, %v1789
    %v1832 = vpack.c.b16 %v1794, %v1792
    %v1833 = vpack.c.b16 %v1795, %v1793
    %v1834 = vpack.c.b16 %v1798, %v1796
    %v1835 = vpack.c.b16 %v1799, %v1797
    %v1836 = vpack.c.b16 %v1802, %v1800
    %v1837 = vpack.c.b16 %v1803, %v1801
    %v1838 = vpack.c.b16 %v1806, %v1804
    %v1839 = vpack.c.b16 %v1807, %v1805
    %1872 = vmatpush.bf16.msra.mxu0 %v1822
    %1873 = vmatpush.bf16.msra.mxu0 %v1820
    %1874 = vmatpush.bf16.msra.mxu0 %v1818
    %1875 = vmatpush.bf16.msra.mxu0 %v1816
    %1876 = vmatpush.bf16.msra.mxu0 %v1814
    %1877 = vmatpush.bf16.msra.mxu0 %v1812
    %1878 = vmatpush.bf16.msra.mxu0 %v1810
    %1879 = vmatpush.bf16.msra.mxu0 %v1808
    %1880 = vmatmul.bf16.gmra.mxu0 %v1708
    %v1881 = vpop.f32.mrf.mxu0
    %v1882 = vadd.f32 0.0, %v1881
    %v1883 = vpop.f32.mrf.mxu0
    %1884 = vdwg.mxu0
    %1885 = vmatpush.bf16.msra.mxu0 %v1838
    %1886 = vmatpush.bf16.msra.mxu0 %v1836
    %1887 = vmatpush.bf16.msra.mxu0 %v1834
    %1888 = vmatpush.bf16.msra.mxu0 %v1832
    %1889 = vmatpush.bf16.msra.mxu0 %v1830
    %1890 = vmatpush.bf16.msra.mxu0 %v1828
    %1891 = vmatpush.bf16.msra.mxu0 %v1826
    %1892 = vmatpush.bf16.msra.mxu0 %v1824
    %1893 = vmatmul.bf16.gmra.mxu0 %v1709
    %v1894 = vpop.f32.mrf.mxu0
    %v1895 = vadd.f32 %v1882, %v1894
    %v1896 = vpop.f32.mrf.mxu0
    %1897 = vdwg.mxu0
    %1898 = vmatpush.bf16.msra.mxu0 %v1823
    %1899 = vmatpush.bf16.msra.mxu0 %v1821
    %1900 = vmatpush.bf16.msra.mxu0 %v1819
    %1901 = vmatpush.bf16.msra.mxu0 %v1817
    %1902 = vmatpush.bf16.msra.mxu0 %v1815
    %1903 = vmatpush.bf16.msra.mxu0 %v1813
    %1904 = vmatpush.bf16.msra.mxu0 %v1811
    %1905 = vmatpush.bf16.msra.mxu0 %v1809
    %1906 = vmatmul.bf16.gmra.mxu0 %v1708
    %v1907 = vpop.f32.mrf.mxu0
    %v1908 = vadd.f32 0.0, %v1907
    %v1909 = vpop.f32.mrf.mxu0
    %1910 = vdwg.mxu0
    %1911 = vmatpush.bf16.msra.mxu0 %v1839
    %1912 = vmatpush.bf16.msra.mxu0 %v1837
    %1913 = vmatpush.bf16.msra.mxu0 %v1835
    %1914 = vmatpush.bf16.msra.mxu0 %v1833
    %1915 = vmatpush.bf16.msra.mxu0 %v1831
    %1916 = vmatpush.bf16.msra.mxu0 %v1829
    %1917 = vmatpush.bf16.msra.mxu0 %v1827
    %1918 = vmatpush.bf16.msra.mxu0 %v1825
    %1919 = vmatmul.bf16.gmra.mxu0 %v1709
    %v1920 = vpop.f32.mrf.mxu0
    %v1921 = vadd.f32 %v1908, %v1920
    %v1922 = vpop.f32.mrf.mxu0
    %1923 = vdwg.mxu0
    %v1924 = vadd.f32 %v612, %v1895
    %v1925 = vadd.f32 %v626, %v1921
    %v1926 = vtanh.pop %v1924
    %v1927 = vtanh.pop %v1925
    %1928 = vst [vmem:[%s9 + $0x10] sm:$0x3] %v1926
    %1929 = vst [vmem:[%s9 + $0x18] sm:$0x3] %v1927
    %v1930 = vpack.c.bf16 %v1926, %v1926
    %v1931 = vpack.c.bf16 %v1927, %v1927
    %v1932 = vld [vmem:[#allocation7] sm:$0xff]
    %v1933 = vld [vmem:[#allocation7 + $0x8] sm:$0xff]
    %v1934 = vld [vmem:[#allocation7 + $0x10] sm:$0xff]
    %v1935 = vld [vmem:[#allocation7 + $0x18] sm:$0xff]
    %v1936 = vld [vmem:[#allocation7 + $0x20] sm:$0xff]
    %v1937 = vld [vmem:[#allocation7 + $0x28] sm:$0xff]
    %v1938 = vld [vmem:[#allocation7 + $0x30] sm:$0xff]
    %v1939 = vld [vmem:[#allocation7 + $0x38] sm:$0xff]
    %v1940 = vld [vmem:[#allocation7 + $0x40] sm:$0xff]
    %v1941 = vld [vmem:[#allocation7 + $0x48] sm:$0xff]
    %v1942 = vld [vmem:[#allocation7 + $0x50] sm:$0xff]
    %v1943 = vld [vmem:[#allocation7 + $0x58] sm:$0xff]
    %v1944 = vld [vmem:[#allocation7 + $0x60] sm:$0xff]
    %v1945 = vld [vmem:[#allocation7 + $0x68] sm:$0xff]
    %v1946 = vld [vmem:[#allocation7 + $0x70] sm:$0xff]
    %v1947 = vld [vmem:[#allocation7 + $0x78] sm:$0xff]
    %v1948 = vld [vmem:[#allocation7 + $0x80] sm:$0xff]
    %v1949 = vld [vmem:[#allocation7 + $0x88] sm:$0xff]
    %v1950 = vld [vmem:[#allocation7 + $0x90] sm:$0xff]
    %v1951 = vld [vmem:[#allocation7 + $0x98] sm:$0xff]
    %v1952 = vld [vmem:[#allocation7 + $0xa0] sm:$0xff]
    %v1953 = vld [vmem:[#allocation7 + $0xa8] sm:$0xff]
    %v1954 = vld [vmem:[#allocation7 + $0xb0] sm:$0xff]
    %v1955 = vld [vmem:[#allocation7 + $0xb8] sm:$0xff]
    %v1956 = vld [vmem:[#allocation7 + $0xc0] sm:$0xff]
    %v1957 = vld [vmem:[#allocation7 + $0xc8] sm:$0xff]
    %v1958 = vld [vmem:[#allocation7 + $0xd0] sm:$0xff]
    %v1959 = vld [vmem:[#allocation7 + $0xd8] sm:$0xff]
    %v1960 = vld [vmem:[#allocation7 + $0xe0] sm:$0xff]
    %v1961 = vld [vmem:[#allocation7 + $0xe8] sm:$0xff]
    %v1962 = vld [vmem:[#allocation7 + $0xf0] sm:$0xff]
    %v1963 = vld [vmem:[#allocation7 + $0xf8] sm:$0xff]
    %v1996 = vunpack.c.l.b16 %v1932
    %v1997 = vunpack.c.h.b16 %v1932
    %v1998 = vunpack.c.l.b16 %v1933
    %v1999 = vunpack.c.h.b16 %v1933
    %v2000 = vunpack.c.l.b16 %v1934
    %v2001 = vunpack.c.h.b16 %v1934
    %v2002 = vunpack.c.l.b16 %v1935
    %v2003 = vunpack.c.h.b16 %v1935
    %v2004 = vunpack.c.l.b16 %v1936
    %v2005 = vunpack.c.h.b16 %v1936
    %v2006 = vunpack.c.l.b16 %v1937
    %v2007 = vunpack.c.h.b16 %v1937
    %v2008 = vunpack.c.l.b16 %v1938
    %v2009 = vunpack.c.h.b16 %v1938
    %v2010 = vunpack.c.l.b16 %v1939
    %v2011 = vunpack.c.h.b16 %v1939
    %v2012 = vunpack.c.l.b16 %v1940
    %v2013 = vunpack.c.h.b16 %v1940
    %v2014 = vunpack.c.l.b16 %v1941
    %v2015 = vunpack.c.h.b16 %v1941
    %v2016 = vunpack.c.l.b16 %v1942
    %v2017 = vunpack.c.h.b16 %v1942
    %v2018 = vunpack.c.l.b16 %v1943
    %v2019 = vunpack.c.h.b16 %v1943
    %v2020 = vunpack.c.l.b16 %v1944
    %v2021 = vunpack.c.h.b16 %v1944
    %v2022 = vunpack.c.l.b16 %v1945
    %v2023 = vunpack.c.h.b16 %v1945
    %v2024 = vunpack.c.l.b16 %v1946
    %v2025 = vunpack.c.h.b16 %v1946
    %v2026 = vunpack.c.l.b16 %v1947
    %v2027 = vunpack.c.h.b16 %v1947
    %v2028 = vunpack.c.l.b16 %v1948
    %v2029 = vunpack.c.h.b16 %v1948
    %v2030 = vunpack.c.l.b16 %v1949
    %v2031 = vunpack.c.h.b16 %v1949
    %v2032 = vunpack.c.l.b16 %v1950
    %v2033 = vunpack.c.h.b16 %v1950
    %v2034 = vunpack.c.l.b16 %v1951
    %v2035 = vunpack.c.h.b16 %v1951
    %v2036 = vunpack.c.l.b16 %v1952
    %v2037 = vunpack.c.h.b16 %v1952
    %v2038 = vunpack.c.l.b16 %v1953
    %v2039 = vunpack.c.h.b16 %v1953
    %v2040 = vunpack.c.l.b16 %v1954
    %v2041 = vunpack.c.h.b16 %v1954
    %v2042 = vunpack.c.l.b16 %v1955
    %v2043 = vunpack.c.h.b16 %v1955
    %v2044 = vunpack.c.l.b16 %v1956
    %v2045 = vunpack.c.h.b16 %v1956
    %v2046 = vunpack.c.l.b16 %v1957
    %v2047 = vunpack.c.h.b16 %v1957
    %v2048 = vunpack.c.l.b16 %v1958
    %v2049 = vunpack.c.h.b16 %v1958
    %v2050 = vunpack.c.l.b16 %v1959
    %v2051 = vunpack.c.h.b16 %v1959
    %v2052 = vunpack.c.l.b16 %v1960
    %v2053 = vunpack.c.h.b16 %v1960
    %v2054 = vunpack.c.l.b16 %v1961
    %v2055 = vunpack.c.h.b16 %v1961
    %v2056 = vunpack.c.l.b16 %v1962
    %v2057 = vunpack.c.h.b16 %v1962
    %v2058 = vunpack.c.l.b16 %v1963
    %v2059 = vunpack.c.h.b16 %v1963
    %v2060 = vpack.c.b16 %v1998, %v1996
    %v2061 = vpack.c.b16 %v1999, %v1997
    %v2062 = vpack.c.b16 %v2002, %v2000
    %v2063 = vpack.c.b16 %v2003, %v2001
    %v2064 = vpack.c.b16 %v2006, %v2004
    %v2065 = vpack.c.b16 %v2007, %v2005
    %v2066 = vpack.c.b16 %v2010, %v2008
    %v2067 = vpack.c.b16 %v2011, %v2009
    %v2068 = vpack.c.b16 %v2014, %v2012
    %v2069 = vpack.c.b16 %v2015, %v2013
    %v2070 = vpack.c.b16 %v2018, %v2016
    %v2071 = vpack.c.b16 %v2019, %v2017
    %v2072 = vpack.c.b16 %v2022, %v2020
    %v2073 = vpack.c.b16 %v2023, %v2021
    %v2074 = vpack.c.b16 %v2026, %v2024
    %v2075 = vpack.c.b16 %v2027, %v2025
    %v2076 = vpack.c.b16 %v2030, %v2028
    %v2077 = vpack.c.b16 %v2031, %v2029
    %v2078 = vpack.c.b16 %v2034, %v2032
    %v2079 = vpack.c.b16 %v2035, %v2033
    %v2080 = vpack.c.b16 %v2038, %v2036
    %v2081 = vpack.c.b16 %v2039, %v2037
    %v2082 = vpack.c.b16 %v2042, %v2040
    %v2083 = vpack.c.b16 %v2043, %v2041
    %v2084 = vpack.c.b16 %v2046, %v2044
    %v2085 = vpack.c.b16 %v2047, %v2045
    %v2086 = vpack.c.b16 %v2050, %v2048
    %v2087 = vpack.c.b16 %v2051, %v2049
    %v2088 = vpack.c.b16 %v2054, %v2052
    %v2089 = vpack.c.b16 %v2055, %v2053
    %v2090 = vpack.c.b16 %v2058, %v2056
    %v2091 = vpack.c.b16 %v2059, %v2057
    %2124 = vmatpush.bf16.msra.mxu0 %v2074
    %2125 = vmatpush.bf16.msra.mxu0 %v2072
    %2126 = vmatpush.bf16.msra.mxu0 %v2070
    %2127 = vmatpush.bf16.msra.mxu0 %v2068
    %2128 = vmatpush.bf16.msra.mxu0 %v2066
    %2129 = vmatpush.bf16.msra.mxu0 %v2064
    %2130 = vmatpush.bf16.msra.mxu0 %v2062
    %2131 = vmatpush.bf16.msra.mxu0 %v2060
    %2132 = vmatmul.bf16.gmra.mxu0 %v1930
    %v2133 = vpop.f32.mrf.mxu0
    %v2134 = vadd.f32 0.0, %v2133
    %v2135 = vpop.f32.mrf.mxu0
    %2136 = vdwg.mxu0
    %2137 = vmatpush.bf16.msra.mxu0 %v2090
    %2138 = vmatpush.bf16.msra.mxu0 %v2088
    %2139 = vmatpush.bf16.msra.mxu0 %v2086
    %2140 = vmatpush.bf16.msra.mxu0 %v2084
    %2141 = vmatpush.bf16.msra.mxu0 %v2082
    %2142 = vmatpush.bf16.msra.mxu0 %v2080
    %2143 = vmatpush.bf16.msra.mxu0 %v2078
    %2144 = vmatpush.bf16.msra.mxu0 %v2076
    %2145 = vmatmul.bf16.gmra.mxu0 %v1931
    %v2146 = vpop.f32.mrf.mxu0
    %v2147 = vadd.f32 %v2134, %v2146
    %v2148 = vpop.f32.mrf.mxu0
    %2149 = vdwg.mxu0
    %2150 = vmatpush.bf16.msra.mxu0 %v2075
    %2151 = vmatpush.bf16.msra.mxu0 %v2073
    %2152 = vmatpush.bf16.msra.mxu0 %v2071
    %2153 = vmatpush.bf16.msra.mxu0 %v2069
    %2154 = vmatpush.bf16.msra.mxu0 %v2067
    %2155 = vmatpush.bf16.msra.mxu0 %v2065
    %2156 = vmatpush.bf16.msra.mxu0 %v2063
    %2157 = vmatpush.bf16.msra.mxu0 %v2061
    %2158 = vmatmul.bf16.gmra.mxu0 %v1930
    %v2159 = vpop.f32.mrf.mxu0
    %v2160 = vadd.f32 0.0, %v2159
    %v2161 = vpop.f32.mrf.mxu0
    %2162 = vdwg.mxu0
    %2163 = vmatpush.bf16.msra.mxu0 %v2091
    %2164 = vmatpush.bf16.msra.mxu0 %v2089
    %2165 = vmatpush.bf16.msra.mxu0 %v2087
    %2166 = vmatpush.bf16.msra.mxu0 %v2085
    %2167 = vmatpush.bf16.msra.mxu0 %v2083
    %2168 = vmatpush.bf16.msra.mxu0 %v2081
    %2169 = vmatpush.bf16.msra.mxu0 %v2079
    %2170 = vmatpush.bf16.msra.mxu0 %v2077
    %2171 = vmatmul.bf16.gmra.mxu0 %v1931
    %v2172 = vpop.f32.mrf.mxu0
    %v2173 = vadd.f32 %v2160, %v2172
    %v2174 = vpop.f32.mrf.mxu0
    %2175 = vdwg.mxu0
    %v2178 = vrot.slane %v2147, 6
    %v2179 = vrot.slane %v2173, 6
    %v2182 = vadd.f32 %v612, %v2178
    %v2183 = vadd.f32 %v626, %v2179
    %v2184 = vtanh.pop %v2182
    %v2185 = vtanh.pop %v2183
    %2186 = vst [vmem:[%s9 + $0x10] sm:$0xc] %v2184
    %2187 = vst [vmem:[%s9 + $0x18] sm:$0xc] %v2185
    %v2188 = vpack.c.bf16 %v2184, %v2184
    %v2189 = vpack.c.bf16 %v2185, %v2185
    %v2190 = vld [vmem:[#allocation7] sm:$0xff]
    %v2191 = vld [vmem:[#allocation7 + $0x8] sm:$0xff]
    %v2192 = vld [vmem:[#allocation7 + $0x10] sm:$0xff]
    %v2193 = vld [vmem:[#allocation7 + $0x18] sm:$0xff]
    %v2194 = vld [vmem:[#allocation7 + $0x20] sm:$0xff]
    %v2195 = vld [vmem:[#allocation7 + $0x28] sm:$0xff]
    %v2196 = vld [vmem:[#allocation7 + $0x30] sm:$0xff]
    %v2197 = vld [vmem:[#allocation7 + $0x38] sm:$0xff]
    %v2198 = vld [vmem:[#allocation7 + $0x40] sm:$0xff]
    %v2199 = vld [vmem:[#allocation7 + $0x48] sm:$0xff]
    %v2200 = vld [vmem:[#allocation7 + $0x50] sm:$0xff]
    %v2201 = vld [vmem:[#allocation7 + $0x58] sm:$0xff]
    %v2202 = vld [vmem:[#allocation7 + $0x60] sm:$0xff]
    %v2203 = vld [vmem:[#allocation7 + $0x68] sm:$0xff]
    %v2204 = vld [vmem:[#allocation7 + $0x70] sm:$0xff]
    %v2205 = vld [vmem:[#allocation7 + $0x78] sm:$0xff]
    %v2206 = vld [vmem:[#allocation7 + $0x80] sm:$0xff]
    %v2207 = vld [vmem:[#allocation7 + $0x88] sm:$0xff]
    %v2208 = vld [vmem:[#allocation7 + $0x90] sm:$0xff]
    %v2209 = vld [vmem:[#allocation7 + $0x98] sm:$0xff]
    %v2210 = vld [vmem:[#allocation7 + $0xa0] sm:$0xff]
    %v2211 = vld [vmem:[#allocation7 + $0xa8] sm:$0xff]
    %v2212 = vld [vmem:[#allocation7 + $0xb0] sm:$0xff]
    %v2213 = vld [vmem:[#allocation7 + $0xb8] sm:$0xff]
    %v2214 = vld [vmem:[#allocation7 + $0xc0] sm:$0xff]
    %v2215 = vld [vmem:[#allocation7 + $0xc8] sm:$0xff]
    %v2216 = vld [vmem:[#allocation7 + $0xd0] sm:$0xff]
    %v2217 = vld [vmem:[#allocation7 + $0xd8] sm:$0xff]
    %v2218 = vld [vmem:[#allocation7 + $0xe0] sm:$0xff]
    %v2219 = vld [vmem:[#allocation7 + $0xe8] sm:$0xff]
    %v2220 = vld [vmem:[#allocation7 + $0xf0] sm:$0xff]
    %v2221 = vld [vmem:[#allocation7 + $0xf8] sm:$0xff]
    %v2224 = vrot.slane %v2188, 1
    %v2225 = vrot.slane %v2189, 1
    %v2260 = vunpack.c.l.b16 %v2190
    %v2261 = vunpack.c.h.b16 %v2190
    %v2262 = vunpack.c.l.b16 %v2191
    %v2263 = vunpack.c.h.b16 %v2191
    %v2264 = vunpack.c.l.b16 %v2192
    %v2265 = vunpack.c.h.b16 %v2192
    %v2266 = vunpack.c.l.b16 %v2193
    %v2267 = vunpack.c.h.b16 %v2193
    %v2268 = vunpack.c.l.b16 %v2194
    %v2269 = vunpack.c.h.b16 %v2194
    %v2270 = vunpack.c.l.b16 %v2195
    %v2271 = vunpack.c.h.b16 %v2195
    %v2272 = vunpack.c.l.b16 %v2196
    %v2273 = vunpack.c.h.b16 %v2196
    %v2274 = vunpack.c.l.b16 %v2197
    %v2275 = vunpack.c.h.b16 %v2197
    %v2276 = vunpack.c.l.b16 %v2198
    %v2277 = vunpack.c.h.b16 %v2198
    %v2278 = vunpack.c.l.b16 %v2199
    %v2279 = vunpack.c.h.b16 %v2199
    %v2280 = vunpack.c.l.b16 %v2200
    %v2281 = vunpack.c.h.b16 %v2200
    %v2282 = vunpack.c.l.b16 %v2201
    %v2283 = vunpack.c.h.b16 %v2201
    %v2284 = vunpack.c.l.b16 %v2202
    %v2285 = vunpack.c.h.b16 %v2202
    %v2286 = vunpack.c.l.b16 %v2203
    %v2287 = vunpack.c.h.b16 %v2203
    %v2288 = vunpack.c.l.b16 %v2204
    %v2289 = vunpack.c.h.b16 %v2204
    %v2290 = vunpack.c.l.b16 %v2205
    %v2291 = vunpack.c.h.b16 %v2205
    %v2292 = vunpack.c.l.b16 %v2206
    %v2293 = vunpack.c.h.b16 %v2206
    %v2294 = vunpack.c.l.b16 %v2207
    %v2295 = vunpack.c.h.b16 %v2207
    %v2296 = vunpack.c.l.b16 %v2208
    %v2297 = vunpack.c.h.b16 %v2208
    %v2298 = vunpack.c.l.b16 %v2209
    %v2299 = vunpack.c.h.b16 %v2209
    %v2300 = vunpack.c.l.b16 %v2210
    %v2301 = vunpack.c.h.b16 %v2210
    %v2302 = vunpack.c.l.b16 %v2211
    %v2303 = vunpack.c.h.b16 %v2211
    %v2304 = vunpack.c.l.b16 %v2212
    %v2305 = vunpack.c.h.b16 %v2212
    %v2306 = vunpack.c.l.b16 %v2213
    %v2307 = vunpack.c.h.b16 %v2213
    %v2308 = vunpack.c.l.b16 %v2214
    %v2309 = vunpack.c.h.b16 %v2214
    %v2310 = vunpack.c.l.b16 %v2215
    %v2311 = vunpack.c.h.b16 %v2215
    %v2312 = vunpack.c.l.b16 %v2216
    %v2313 = vunpack.c.h.b16 %v2216
    %v2314 = vunpack.c.l.b16 %v2217
    %v2315 = vunpack.c.h.b16 %v2217
    %v2316 = vunpack.c.l.b16 %v2218
    %v2317 = vunpack.c.h.b16 %v2218
    %v2318 = vunpack.c.l.b16 %v2219
    %v2319 = vunpack.c.h.b16 %v2219
    %v2320 = vunpack.c.l.b16 %v2220
    %v2321 = vunpack.c.h.b16 %v2220
    %v2322 = vunpack.c.l.b16 %v2221
    %v2323 = vunpack.c.h.b16 %v2221
    %v2324 = vpack.c.b16 %v2262, %v2260
    %v2325 = vpack.c.b16 %v2263, %v2261
    %v2326 = vpack.c.b16 %v2266, %v2264
    %v2327 = vpack.c.b16 %v2267, %v2265
    %v2328 = vpack.c.b16 %v2270, %v2268
    %v2329 = vpack.c.b16 %v2271, %v2269
    %v2330 = vpack.c.b16 %v2274, %v2272
    %v2331 = vpack.c.b16 %v2275, %v2273
    %v2332 = vpack.c.b16 %v2278, %v2276
    %v2333 = vpack.c.b16 %v2279, %v2277
    %v2334 = vpack.c.b16 %v2282, %v2280
    %v2335 = vpack.c.b16 %v2283, %v2281
    %v2336 = vpack.c.b16 %v2286, %v2284
    %v2337 = vpack.c.b16 %v2287, %v2285
    %v2338 = vpack.c.b16 %v2290, %v2288
    %v2339 = vpack.c.b16 %v2291, %v2289
    %v2340 = vpack.c.b16 %v2294, %v2292
    %v2341 = vpack.c.b16 %v2295, %v2293
    %v2342 = vpack.c.b16 %v2298, %v2296
    %v2343 = vpack.c.b16 %v2299, %v2297
    %v2344 = vpack.c.b16 %v2302, %v2300
    %v2345 = vpack.c.b16 %v2303, %v2301
    %v2346 = vpack.c.b16 %v2306, %v2304
    %v2347 = vpack.c.b16 %v2307, %v2305
    %v2348 = vpack.c.b16 %v2310, %v2308
    %v2349 = vpack.c.b16 %v2311, %v2309
    %v2350 = vpack.c.b16 %v2314, %v2312
    %v2351 = vpack.c.b16 %v2315, %v2313
    %v2352 = vpack.c.b16 %v2318, %v2316
    %v2353 = vpack.c.b16 %v2319, %v2317
    %v2354 = vpack.c.b16 %v2322, %v2320
    %v2355 = vpack.c.b16 %v2323, %v2321
    %2388 = vmatpush.bf16.msra.mxu0 %v2338
    %2389 = vmatpush.bf16.msra.mxu0 %v2336
    %2390 = vmatpush.bf16.msra.mxu0 %v2334
    %2391 = vmatpush.bf16.msra.mxu0 %v2332
    %2392 = vmatpush.bf16.msra.mxu0 %v2330
    %2393 = vmatpush.bf16.msra.mxu0 %v2328
    %2394 = vmatpush.bf16.msra.mxu0 %v2326
    %2395 = vmatpush.bf16.msra.mxu0 %v2324
    %2396 = vmatmul.bf16.gmra.mxu0 %v2224
    %v2397 = vpop.f32.mrf.mxu0
    %v2398 = vadd.f32 0.0, %v2397
    %v2399 = vpop.f32.mrf.mxu0
    %2400 = vdwg.mxu0
    %2401 = vmatpush.bf16.msra.mxu0 %v2354
    %2402 = vmatpush.bf16.msra.mxu0 %v2352
    %2403 = vmatpush.bf16.msra.mxu0 %v2350
    %2404 = vmatpush.bf16.msra.mxu0 %v2348
    %2405 = vmatpush.bf16.msra.mxu0 %v2346
    %2406 = vmatpush.bf16.msra.mxu0 %v2344
    %2407 = vmatpush.bf16.msra.mxu0 %v2342
    %2408 = vmatpush.bf16.msra.mxu0 %v2340
    %2409 = vmatmul.bf16.gmra.mxu0 %v2225
    %v2410 = vpop.f32.mrf.mxu0
    %v2411 = vadd.f32 %v2398, %v2410
    %v2412 = vpop.f32.mrf.mxu0
    %2413 = vdwg.mxu0
    %2414 = vmatpush.bf16.msra.mxu0 %v2339
    %2415 = vmatpush.bf16.msra.mxu0 %v2337
    %2416 = vmatpush.bf16.msra.mxu0 %v2335
    %2417 = vmatpush.bf16.msra.mxu0 %v2333
    %2418 = vmatpush.bf16.msra.mxu0 %v2331
    %2419 = vmatpush.bf16.msra.mxu0 %v2329
    %2420 = vmatpush.bf16.msra.mxu0 %v2327
    %2421 = vmatpush.bf16.msra.mxu0 %v2325
    %2422 = vmatmul.bf16.gmra.mxu0 %v2224
    %v2423 = vpop.f32.mrf.mxu0
    %v2424 = vadd.f32 0.0, %v2423
    %v2425 = vpop.f32.mrf.mxu0
    %2426 = vdwg.mxu0
    %2427 = vmatpush.bf16.msra.mxu0 %v2355
    %2428 = vmatpush.bf16.msra.mxu0 %v2353
    %2429 = vmatpush.bf16.msra.mxu0 %v2351
    %2430 = vmatpush.bf16.msra.mxu0 %v2349
    %2431 = vmatpush.bf16.msra.mxu0 %v2347
    %2432 = vmatpush.bf16.msra.mxu0 %v2345
    %2433 = vmatpush.bf16.msra.mxu0 %v2343
    %2434 = vmatpush.bf16.msra.mxu0 %v2341
    %2435 = vmatmul.bf16.gmra.mxu0 %v2225
    %v2436 = vpop.f32.mrf.mxu0
    %v2437 = vadd.f32 %v2424, %v2436
    %v2438 = vpop.f32.mrf.mxu0
    %2439 = vdwg.mxu0
    %v2442 = vrot.slane %v2411, 4
    %v2443 = vrot.slane %v2437, 4
    %v2446 = vadd.f32 %v612, %v2442
    %v2447 = vadd.f32 %v626, %v2443
    %v2448 = vtanh.pop %v2446
    %v2449 = vtanh.pop %v2447
    %2450 = vst [vmem:[%s9 + $0x10] sm:$0x30] %v2448
    %2451 = vst [vmem:[%s9 + $0x18] sm:$0x30] %v2449
    %v2452 = vpack.c.bf16 %v2448, %v2448
    %v2453 = vpack.c.bf16 %v2449, %v2449
    %v2454 = vld [vmem:[#allocation7] sm:$0xff]
    %v2455 = vld [vmem:[#allocation7 + $0x8] sm:$0xff]
    %v2456 = vld [vmem:[#allocation7 + $0x10] sm:$0xff]
    %v2457 = vld [vmem:[#allocation7 + $0x18] sm:$0xff]
    %v2458 = vld [vmem:[#allocation7 + $0x20] sm:$0xff]
    %v2459 = vld [vmem:[#allocation7 + $0x28] sm:$0xff]
    %v2460 = vld [vmem:[#allocation7 + $0x30] sm:$0xff]
    %v2461 = vld [vmem:[#allocation7 + $0x38] sm:$0xff]
    %v2462 = vld [vmem:[#allocation7 + $0x40] sm:$0xff]
    %v2463 = vld [vmem:[#allocation7 + $0x48] sm:$0xff]
    %v2464 = vld [vmem:[#allocation7 + $0x50] sm:$0xff]
    %v2465 = vld [vmem:[#allocation7 + $0x58] sm:$0xff]
    %v2466 = vld [vmem:[#allocation7 + $0x60] sm:$0xff]
    %v2467 = vld [vmem:[#allocation7 + $0x68] sm:$0xff]
    %v2468 = vld [vmem:[#allocation7 + $0x70] sm:$0xff]
    %v2469 = vld [vmem:[#allocation7 + $0x78] sm:$0xff]
    %v2470 = vld [vmem:[#allocation7 + $0x80] sm:$0xff]
    %v2471 = vld [vmem:[#allocation7 + $0x88] sm:$0xff]
    %v2472 = vld [vmem:[#allocation7 + $0x90] sm:$0xff]
    %v2473 = vld [vmem:[#allocation7 + $0x98] sm:$0xff]
    %v2474 = vld [vmem:[#allocation7 + $0xa0] sm:$0xff]
    %v2475 = vld [vmem:[#allocation7 + $0xa8] sm:$0xff]
    %v2476 = vld [vmem:[#allocation7 + $0xb0] sm:$0xff]
    %v2477 = vld [vmem:[#allocation7 + $0xb8] sm:$0xff]
    %v2478 = vld [vmem:[#allocation7 + $0xc0] sm:$0xff]
    %v2479 = vld [vmem:[#allocation7 + $0xc8] sm:$0xff]
    %v2480 = vld [vmem:[#allocation7 + $0xd0] sm:$0xff]
    %v2481 = vld [vmem:[#allocation7 + $0xd8] sm:$0xff]
    %v2482 = vld [vmem:[#allocation7 + $0xe0] sm:$0xff]
    %v2483 = vld [vmem:[#allocation7 + $0xe8] sm:$0xff]
    %v2484 = vld [vmem:[#allocation7 + $0xf0] sm:$0xff]
    %v2485 = vld [vmem:[#allocation7 + $0xf8] sm:$0xff]
    %v2488 = vrot.slane %v2452, 2
    %v2489 = vrot.slane %v2453, 2
    %v2524 = vunpack.c.l.b16 %v2454
    %v2525 = vunpack.c.h.b16 %v2454
    %v2526 = vunpack.c.l.b16 %v2455
    %v2527 = vunpack.c.h.b16 %v2455
    %v2528 = vunpack.c.l.b16 %v2456
    %v2529 = vunpack.c.h.b16 %v2456
    %v2530 = vunpack.c.l.b16 %v2457
    %v2531 = vunpack.c.h.b16 %v2457
    %v2532 = vunpack.c.l.b16 %v2458
    %v2533 = vunpack.c.h.b16 %v2458
    %v2534 = vunpack.c.l.b16 %v2459
    %v2535 = vunpack.c.h.b16 %v2459
    %v2536 = vunpack.c.l.b16 %v2460
    %v2537 = vunpack.c.h.b16 %v2460
    %v2538 = vunpack.c.l.b16 %v2461
    %v2539 = vunpack.c.h.b16 %v2461
    %v2540 = vunpack.c.l.b16 %v2462
    %v2541 = vunpack.c.h.b16 %v2462
    %v2542 = vunpack.c.l.b16 %v2463
    %v2543 = vunpack.c.h.b16 %v2463
    %v2544 = vunpack.c.l.b16 %v2464
    %v2545 = vunpack.c.h.b16 %v2464
    %v2546 = vunpack.c.l.b16 %v2465
    %v2547 = vunpack.c.h.b16 %v2465
    %v2548 = vunpack.c.l.b16 %v2466
    %v2549 = vunpack.c.h.b16 %v2466
    %v2550 = vunpack.c.l.b16 %v2467
    %v2551 = vunpack.c.h.b16 %v2467
    %v2552 = vunpack.c.l.b16 %v2468
    %v2553 = vunpack.c.h.b16 %v2468
    %v2554 = vunpack.c.l.b16 %v2469
    %v2555 = vunpack.c.h.b16 %v2469
    %v2556 = vunpack.c.l.b16 %v2470
    %v2557 = vunpack.c.h.b16 %v2470
    %v2558 = vunpack.c.l.b16 %v2471
    %v2559 = vunpack.c.h.b16 %v2471
    %v2560 = vunpack.c.l.b16 %v2472
    %v2561 = vunpack.c.h.b16 %v2472
    %v2562 = vunpack.c.l.b16 %v2473
    %v2563 = vunpack.c.h.b16 %v2473
    %v2564 = vunpack.c.l.b16 %v2474
    %v2565 = vunpack.c.h.b16 %v2474
    %v2566 = vunpack.c.l.b16 %v2475
    %v2567 = vunpack.c.h.b16 %v2475
    %v2568 = vunpack.c.l.b16 %v2476
    %v2569 = vunpack.c.h.b16 %v2476
    %v2570 = vunpack.c.l.b16 %v2477
    %v2571 = vunpack.c.h.b16 %v2477
    %v2572 = vunpack.c.l.b16 %v2478
    %v2573 = vunpack.c.h.b16 %v2478
    %v2574 = vunpack.c.l.b16 %v2479
    %v2575 = vunpack.c.h.b16 %v2479
    %v2576 = vunpack.c.l.b16 %v2480
    %v2577 = vunpack.c.h.b16 %v2480
    %v2578 = vunpack.c.l.b16 %v2481
    %v2579 = vunpack.c.h.b16 %v2481
    %v2580 = vunpack.c.l.b16 %v2482
    %v2581 = vunpack.c.h.b16 %v2482
    %v2582 = vunpack.c.l.b16 %v2483
    %v2583 = vunpack.c.h.b16 %v2483
    %v2584 = vunpack.c.l.b16 %v2484
    %v2585 = vunpack.c.h.b16 %v2484
    %v2586 = vunpack.c.l.b16 %v2485
    %v2587 = vunpack.c.h.b16 %v2485
    %v2588 = vpack.c.b16 %v2526, %v2524
    %v2589 = vpack.c.b16 %v2527, %v2525
    %v2590 = vpack.c.b16 %v2530, %v2528
    %v2591 = vpack.c.b16 %v2531, %v2529
    %v2592 = vpack.c.b16 %v2534, %v2532
    %v2593 = vpack.c.b16 %v2535, %v2533
    %v2594 = vpack.c.b16 %v2538, %v2536
    %v2595 = vpack.c.b16 %v2539, %v2537
    %v2596 = vpack.c.b16 %v2542, %v2540
    %v2597 = vpack.c.b16 %v2543, %v2541
    %v2598 = vpack.c.b16 %v2546, %v2544
    %v2599 = vpack.c.b16 %v2547, %v2545
    %v2600 = vpack.c.b16 %v2550, %v2548
    %v2601 = vpack.c.b16 %v2551, %v2549
    %v2602 = vpack.c.b16 %v2554, %v2552
    %v2603 = vpack.c.b16 %v2555, %v2553
    %v2604 = vpack.c.b16 %v2558, %v2556
    %v2605 = vpack.c.b16 %v2559, %v2557
    %v2606 = vpack.c.b16 %v2562, %v2560
    %v2607 = vpack.c.b16 %v2563, %v2561
    %v2608 = vpack.c.b16 %v2566, %v2564
    %v2609 = vpack.c.b16 %v2567, %v2565
    %v2610 = vpack.c.b16 %v2570, %v2568
    %v2611 = vpack.c.b16 %v2571, %v2569
    %v2612 = vpack.c.b16 %v2574, %v2572
    %v2613 = vpack.c.b16 %v2575, %v2573
    %v2614 = vpack.c.b16 %v2578, %v2576
    %v2615 = vpack.c.b16 %v2579, %v2577
    %v2616 = vpack.c.b16 %v2582, %v2580
    %v2617 = vpack.c.b16 %v2583, %v2581
    %v2618 = vpack.c.b16 %v2586, %v2584
    %v2619 = vpack.c.b16 %v2587, %v2585
    %2652 = vmatpush.bf16.msra.mxu0 %v2602
    %2653 = vmatpush.bf16.msra.mxu0 %v2600
    %2654 = vmatpush.bf16.msra.mxu0 %v2598
    %2655 = vmatpush.bf16.msra.mxu0 %v2596
    %2656 = vmatpush.bf16.msra.mxu0 %v2594
    %2657 = vmatpush.bf16.msra.mxu0 %v2592
    %2658 = vmatpush.bf16.msra.mxu0 %v2590
    %2659 = vmatpush.bf16.msra.mxu0 %v2588
    %2660 = vmatmul.bf16.gmra.mxu0 %v2488
    %v2661 = vpop.f32.mrf.mxu0
    %v2662 = vadd.f32 0.0, %v2661
    %v2663 = vpop.f32.mrf.mxu0
    %2664 = vdwg.mxu0
    %2665 = vmatpush.bf16.msra.mxu0 %v2618
    %2666 = vmatpush.bf16.msra.mxu0 %v2616
    %2667 = vmatpush.bf16.msra.mxu0 %v2614
    %2668 = vmatpush.bf16.msra.mxu0 %v2612
    %2669 = vmatpush.bf16.msra.mxu0 %v2610
    %2670 = vmatpush.bf16.msra.mxu0 %v2608
    %2671 = vmatpush.bf16.msra.mxu0 %v2606
    %2672 = vmatpush.bf16.msra.mxu0 %v2604
    %2673 = vmatmul.bf16.gmra.mxu0 %v2489
    %v2674 = vpop.f32.mrf.mxu0
    %v2675 = vadd.f32 %v2662, %v2674
    %v2676 = vpop.f32.mrf.mxu0
    %2677 = vdwg.mxu0
    %2678 = vmatpush.bf16.msra.mxu0 %v2603
    %2679 = vmatpush.bf16.msra.mxu0 %v2601
    %2680 = vmatpush.bf16.msra.mxu0 %v2599
    %2681 = vmatpush.bf16.msra.mxu0 %v2597
    %2682 = vmatpush.bf16.msra.mxu0 %v2595
    %2683 = vmatpush.bf16.msra.mxu0 %v2593
    %2684 = vmatpush.bf16.msra.mxu0 %v2591
    %2685 = vmatpush.bf16.msra.mxu0 %v2589
    %2686 = vmatmul.bf16.gmra.mxu0 %v2488
    %v2687 = vpop.f32.mrf.mxu0
    %v2688 = vadd.f32 0.0, %v2687
    %v2689 = vpop.f32.mrf.mxu0
    %2690 = vdwg.mxu0
    %2691 = vmatpush.bf16.msra.mxu0 %v2619
    %2692 = vmatpush.bf16.msra.mxu0 %v2617
    %2693 = vmatpush.bf16.msra.mxu0 %v2615
    %2694 = vmatpush.bf16.msra.mxu0 %v2613
    %2695 = vmatpush.bf16.msra.mxu0 %v2611
    %2696 = vmatpush.bf16.msra.mxu0 %v2609
    %2697 = vmatpush.bf16.msra.mxu0 %v2607
    %2698 = vmatpush.bf16.msra.mxu0 %v2605
    %2699 = vmatmul.bf16.gmra.mxu0 %v2489
    %v2700 = vpop.f32.mrf.mxu0
    %v2701 = vadd.f32 %v2688, %v2700
    %v2702 = vpop.f32.mrf.mxu0
    %2703 = vdwg.mxu0
    %v2706 = vrot.slane %v2675, 2
    %v2707 = vrot.slane %v2701, 2
    %v2710 = vadd.f32 %v612, %v2706
    %v2711 = vadd.f32 %v626, %v2707
    %v2712 = vtanh.pop %v2710
    %v2713 = vtanh.pop %v2711
    %2714 = vst [vmem:[%s9 + $0x10] sm:$0xc0] %v2712
    %2715 = vst [vmem:[%s9 + $0x18] sm:$0xc0] %v2713
    %v2716 = vld [vmem:[%s9] sm:$0xff]
    %v2717 = vld [vmem:[%s9 + $0x8] sm:$0xff]
    %v2718 = vld [vmem:[%s9 + $0x10] sm:$0xff]
    %v2719 = vld [vmem:[%s9 + $0x18] sm:$0xff]
    %v2720 = vpack.c.bf16 %v2718, %v2716
    %v2721 = vpack.c.bf16 %v2719, %v2717
    %v2722 = vld [vmem:[#allocation8] sm:$0xf]
    %v2723 = vld [vmem:[#allocation8 + $0x4] sm:$0xf]
    %v2724 = vld [vmem:[#allocation8 + $0x8] sm:$0xf]
    %v2725 = vld [vmem:[#allocation8 + $0xc] sm:$0xf]
    %v2726 = vld [vmem:[#allocation8 + $0x10] sm:$0xf]
    %v2727 = vld [vmem:[#allocation8 + $0x14] sm:$0xf]
    %v2728 = vld [vmem:[#allocation8 + $0x18] sm:$0xf]
    %v2729 = vld [vmem:[#allocation8 + $0x1c] sm:$0xf]
    %v2730 = vld [vmem:[#allocation8 + $0x20] sm:$0xf]
    %v2731 = vld [vmem:[#allocation8 + $0x24] sm:$0xf]
    %v2732 = vld [vmem:[#allocation8 + $0x28] sm:$0xf]
    %v2733 = vld [vmem:[#allocation8 + $0x2c] sm:$0xf]
    %v2734 = vld [vmem:[#allocation8 + $0x30] sm:$0xf]
    %v2735 = vld [vmem:[#allocation8 + $0x34] sm:$0xf]
    %v2736 = vld [vmem:[#allocation8 + $0x38] sm:$0xf]
    %v2737 = vld [vmem:[#allocation8 + $0x3c] sm:$0xf]
    %v2738 = vld [vmem:[#allocation8 + $0x40] sm:$0xf]
    %v2739 = vld [vmem:[#allocation8 + $0x44] sm:$0xf]
    %v2740 = vld [vmem:[#allocation8 + $0x48] sm:$0xf]
    %v2741 = vld [vmem:[#allocation8 + $0x4c] sm:$0xf]
    %v2742 = vld [vmem:[#allocation8 + $0x50] sm:$0xf]
    %v2743 = vld [vmem:[#allocation8 + $0x54] sm:$0xf]
    %v2744 = vld [vmem:[#allocation8 + $0x58] sm:$0xf]
    %v2745 = vld [vmem:[#allocation8 + $0x5c] sm:$0xf]
    %v2746 = vld [vmem:[#allocation8 + $0x60] sm:$0xf]
    %v2747 = vld [vmem:[#allocation8 + $0x64] sm:$0xf]
    %v2748 = vld [vmem:[#allocation8 + $0x68] sm:$0xf]
    %v2749 = vld [vmem:[#allocation8 + $0x6c] sm:$0xf]
    %v2750 = vld [vmem:[#allocation8 + $0x70] sm:$0xf]
    %v2751 = vld [vmem:[#allocation8 + $0x74] sm:$0xf]
    %v2752 = vld [vmem:[#allocation8 + $0x78] sm:$0xf]
    %v2753 = vld [vmem:[#allocation8 + $0x7c] sm:$0xf]
    %v2754 = vld [vmem:[%s6] sm:$0x1]
    %v2756 = vperm.slane %v2754, 0
    %v2790 = vunpack.c.l.b16 %v2722
    %v2791 = vunpack.c.l.b16 %v2723
    %v2792 = vunpack.c.l.b16 %v2724
    %v2793 = vunpack.c.l.b16 %v2725
    %v2794 = vunpack.c.l.b16 %v2726
    %v2795 = vunpack.c.l.b16 %v2727
    %v2796 = vunpack.c.l.b16 %v2728
    %v2797 = vunpack.c.l.b16 %v2729
    %v2798 = vunpack.c.l.b16 %v2730
    %v2799 = vunpack.c.l.b16 %v2731
    %v2800 = vunpack.c.l.b16 %v2732
    %v2801 = vunpack.c.l.b16 %v2733
    %v2802 = vunpack.c.l.b16 %v2734
    %v2803 = vunpack.c.l.b16 %v2735
    %v2804 = vunpack.c.l.b16 %v2736
    %v2805 = vunpack.c.l.b16 %v2737
    %v2806 = vunpack.c.l.b16 %v2738
    %v2807 = vunpack.c.l.b16 %v2739
    %v2808 = vunpack.c.l.b16 %v2740
    %v2809 = vunpack.c.l.b16 %v2741
    %v2810 = vunpack.c.l.b16 %v2742
    %v2811 = vunpack.c.l.b16 %v2743
    %v2812 = vunpack.c.l.b16 %v2744
    %v2813 = vunpack.c.l.b16 %v2745
    %v2814 = vunpack.c.l.b16 %v2746
    %v2815 = vunpack.c.l.b16 %v2747
    %v2816 = vunpack.c.l.b16 %v2748
    %v2817 = vunpack.c.l.b16 %v2749
    %v2818 = vunpack.c.l.b16 %v2750
    %v2819 = vunpack.c.l.b16 %v2751
    %v2820 = vunpack.c.l.b16 %v2752
    %v2821 = vunpack.c.l.b16 %v2753
    %v2822 = vpack.c.b16 %v2791, %v2790
    %v2823 = vpack.c.b16 %v2793, %v2792
    %v2824 = vpack.c.b16 %v2795, %v2794
    %v2825 = vpack.c.b16 %v2797, %v2796
    %v2826 = vpack.c.b16 %v2799, %v2798
    %v2827 = vpack.c.b16 %v2801, %v2800
    %v2828 = vpack.c.b16 %v2803, %v2802
    %v2829 = vpack.c.b16 %v2805, %v2804
    %v2830 = vpack.c.b16 %v2807, %v2806
    %v2831 = vpack.c.b16 %v2809, %v2808
    %v2832 = vpack.c.b16 %v2811, %v2810
    %v2833 = vpack.c.b16 %v2813, %v2812
    %v2834 = vpack.c.b16 %v2815, %v2814
    %v2835 = vpack.c.b16 %v2817, %v2816
    %v2836 = vpack.c.b16 %v2819, %v2818
    %v2837 = vpack.c.b16 %v2821, %v2820
    %2854 = vmatpush.bf16.msra.mxu0 %v2829
    %2855 = vmatpush.bf16.msra.mxu0 %v2828
    %2856 = vmatpush.bf16.msra.mxu0 %v2827
    %2857 = vmatpush.bf16.msra.mxu0 %v2826
    %2858 = vmatpush.bf16.msra.mxu0 %v2825
    %2859 = vmatpush.bf16.msra.mxu0 %v2824
    %2860 = vmatpush.bf16.msra.mxu0 %v2823
    %2861 = vmatpush.bf16.msra.mxu0 %v2822
    %2862 = vmatmul.bf16.gmra.mxu0 %v2720
    %v2863 = vpop.f32.mrf.mxu0
    %v2864 = vadd.f32 %v2756, %v2863
    %v2865 = vpop.f32.mrf.mxu0
    %v2866 = vadd.f32 %v2756, %v2865
    %2867 = vdwg.mxu0
    %2868 = vmatpush.bf16.msra.mxu0 %v2837
    %2869 = vmatpush.bf16.msra.mxu0 %v2836
    %2870 = vmatpush.bf16.msra.mxu0 %v2835
    %2871 = vmatpush.bf16.msra.mxu0 %v2834
    %2872 = vmatpush.bf16.msra.mxu0 %v2833
    %2873 = vmatpush.bf16.msra.mxu0 %v2832
    %2874 = vmatpush.bf16.msra.mxu0 %v2831
    %2875 = vmatpush.bf16.msra.mxu0 %v2830
    %2876 = vmatmul.bf16.gmra.mxu0 %v2721
    %v2877 = vpop.f32.mrf.mxu0
    %v2878 = vadd.f32 %v2864, %v2877
    %v2879 = vpop.f32.mrf.mxu0
    %v2880 = vadd.f32 %v2866, %v2879
    %2881 = vdwg.mxu0
    %2882 = vst [vmem:[%s10] sm:$0xff] %v2878
    %2883 = vst [vmem:[%s10 + $0x8] sm:$0xff] %v2880
    %2884 = vmax.xlane.f32.xlu0 %v2878
    %v2885 = vpop.xlane.xlu0 %2884
    %2886 = vmax.xlane.f32.xlu0 %v2880
    %v2887 = vpop.xlane.xlu0 %2886
    %v2888 = vsub.f32 %v2878, %v2885
    %v2889 = vsub.f32 %v2880, %v2887
    %v2890 = vmul.f32 %v2888, 1.442695
    %v2891 = vpow.pop %v2890
    %v2892 = vmul.f32 %v2889, 1.442695
    %v2893 = vpow.pop %v2892
    %2894 = vadd.xlane.f32.xlu0 %v2891
    %v2895 = vpop.xlane.xlu0 %2894
    %2896 = vadd.xlane.f32.xlu0 %v2893
    %v2897 = vpop.xlane.xlu0 %2896
    %v2898 = vlog2.pop %v2895
    %v2899 = vmul.f32 %v2898, 0.6931472
    %v2900 = vlog2.pop %v2897
    %v2901 = vmul.f32 %v2900, 0.6931472
    %v2902 = vadd.f32 %v2885, %v2899
    %v2903 = vadd.f32 %v2887, %v2901
    %v2904 = vld [vmem:[%s1] sm:$0xff]
    %v2905 = vld [vmem:[%s1 + $0x8] sm:$0xff]
    %2906 = vset.pattern.permute.xlu0 0
    %2907 = vperm.xlu0 %2906, %v2904
    %v2908 = vpop.permute.xlu0 %2907
    %2909 = vset.pattern.permute.xlu0 0
    %2910 = vperm.xlu0 %2909, %v2905
    %v2911 = vpop.permute.xlu0 %2910
    %vm2912 = vcmp.eq.s32.totalorder %v100, %v2908
    %vm2913 = vcmp.eq.s32.totalorder %v100, %v2911
    %v2914 = vsel %vm2912, %v2878, 0.0
    %v2915 = vsel %vm2913, %v2880, 0.0
    %2916 = vadd.xlane.f32.xlu0 %v2914
    %v2917 = vpop.xlane.xlu0 %2916
    %2918 = vadd.xlane.f32.xlu0 %v2915
    %v2919 = vpop.xlane.xlu0 %2918
    %v2920 = vsub.f32 %v2902, %v2917
    %v2921 = vsub.f32 %v2903, %v2919
    %vm2922 = vcmask 7168
    %v2923 = vsel %vm2922, %v2920, 0.0
    %v2924 = vsel %vm2922, %v2921, 0.0
    %v2925 = vadd.f32 %v2923, %v2924
    %2926 = vadd.xlane.f32.xlu0 %v2925
    %v2927 = vpop.xlane.xlu0 %2926
    %v2928 = vrot.slane %v2927, 4
    %v2929 = vadd.f32 %v2927, %v2928
    %v2930 = vrot.slane %v2929, 2
    %v2931 = vadd.f32 %v2929, %v2930
    %v2932 = vrot.slane %v2931, 1
    %v2933 = vadd.f32 %v2931, %v2932
    %s2934 = vtos %v2933
    %v2935 = vstv %s2934
    %v2936 = vmul.f32 %v2935, 0.0625
    %vm2937 = vcmask 0
    %2938 = vst.msk [vmem:[#allocation10] sm:$0x1] %vm2937, %v2936
    // Predicated region
    $region50: #{char_rnn_forward.1} parent=1 // pred_check
      _
    $region51: #{char_rnn_forward.1} parent=1 // pred_check_branch
      %2940 = sbr.rel (0) target = $region53
    $region52: #{char_rnn_forward.1} parent=1 // pred_region
      _
    $region53: #{char_rnn_forward.1} parent=1 // pred_fallthru
      _
    // Predicated region
    $region54: #{char_rnn_forward.1} parent=1 // pred_check
      _
    $region55: #{char_rnn_forward.1} parent=1 // pred_check_branch
      %2942 = sbr.rel (0) target = $region57
    $region56: #{char_rnn_forward.1} parent=1 // pred_region
      _
    $region57: #{char_rnn_forward.1} parent=1 // pred_fallthru
      _
    // Predicated region
    $region58: #{char_rnn_forward.1} parent=1 // pred_check
      _
    $region59: #{char_rnn_forward.1} parent=1 // pred_check_branch
      %2944 = sbr.rel (0) target = $region61
    $region60: #{char_rnn_forward.1} parent=1 // pred_region
      _
    $region61: #{char_rnn_forward.1} parent=1 // pred_fallthru
      _
    // Predicated region
    $region62: #{char_rnn_forward.1} parent=1 // pred_check
      _
    $region63: #{char_rnn_forward.1} parent=1 // pred_check_branch
      %2946 = sbr.rel (0) target = $region65
    $region64: #{char_rnn_forward.1} parent=1 // pred_region
      %2948 = vsyncadd [#allocation4], 0
      %s2950 = sshll.u32 [#allocation10], 4
      %s2951 = int_to_ptr.vmem [resolvable:$true] %s2950
      %s2952 = sshll.u32 %s11, 4
      %s2953 = int_to_ptr.hbm [resolvable:$true] %s2952
      %2955 = dma.vmem_to_hbm [thread:$0]  %s2951, 16, %s2953, [#allocation4]
    $region65: #{char_rnn_forward.1} parent=1 // pred_fallthru
      _
    // Predicated region
    $region66: #{char_rnn_forward.1} parent=1 // pred_check
      _
    $region67: #{char_rnn_forward.1} parent=1 // pred_check_branch
      %2957 = sbr.rel (0) target = $region69
    $region68: #{char_rnn_forward.1} parent=1 // pred_region
      _
    $region69: #{char_rnn_forward.1} parent=1 // pred_fallthru
      _
    // Predicated region
    $region70: #{char_rnn_forward.1} parent=1 // pred_check
      _
    $region71: #{char_rnn_forward.1} parent=1 // pred_check_branch
      %2959 = sbr.rel (0) target = $region73
    $region72: #{char_rnn_forward.1} parent=1 // pred_region
      _
    $region73: #{char_rnn_forward.1} parent=1 // pred_fallthru
      _
    // Predicated region
    $region74: #{char_rnn_forward.1} parent=1 // pred_check
      _
    $region75: #{char_rnn_forward.1} parent=1 // pred_check_branch
      %2961 = sbr.rel (0) target = $region77
    $region76: #{char_rnn_forward.1} parent=1 // pred_region
      _
    $region77: #{char_rnn_forward.1} parent=1 // pred_fallthru
      _
    // Predicated region
    $region78: #{char_rnn_forward.1} parent=1 // pred_check
      _
    $region79: #{char_rnn_forward.1} parent=1 // pred_check_branch
      %2963 = sbr.rel (0) target = $region81
    $region80: #{char_rnn_forward.1} parent=1 // pred_region
      %2965 = dma.done [#allocation4], 16
    $region81: #{char_rnn_forward.1} parent=1 // pred_fallthru
      _
    %2966 = vsyncpa [#allocation3], 1
    %2967 = vsyncpa [#allocation6], 1
    %2968 = vsyncpa [#allocation9], 1
    %2969 = vsyncpa [#allocation4], 1

</llo_original>
